<compile_context>
chip_gen: v5e
topology: v5e:2x2
jax: 0.10.0
libtpu: 0.0.40
codegen_flags: <defaults>
</compile_context>

<pallas_src>
import numpy as np
import jax
import jax.numpy as jnp
from jax import lax
from jax.experimental import pallas as pl
from jax.experimental.pallas import tpu as pltpu


def _check_indices(indices_np, k):
    # mirror of hot_pytorch extension._check_indices: 1->k-uniform, no loops
    for row in indices_np:
        assert len(np.unique(row)) == k, \
            "This extension is only for 1->k-uniform, but given indices contain loops"


# ------------------------------- forward -------------------------------------
def enc_layer_forward(x, indices, params, *, n_heads, tile_e=128):
    """x: (N, D) f32 node features, indices: (E, K) int32 -> (E, D) f32."""
    (g1, b1, wq, wqp, bq, wk, bk, wv, bv,
     wo, bo, g2, b2, w1, bff1, w2, bff2) = params

    N, D = x.shape
    E, K = indices.shape
    DQ = wk.shape[1]
    DV = wv.shape[1]
    F = w1.shape[1]
    dqh = DQ // n_heads
    dvh = DV // n_heads
    assert E % tile_e == 0 and DQ % n_heads == 0 and DV % n_heads == 0

    vmem = pl.BlockSpec(memory_space=pltpu.MemorySpace.VMEM)
    bf16, f32 = jnp.bfloat16, jnp.float32

    # ---------------- phase 1: node-level (runs once, tiny) ------------------
    def node_kernel(x_ref, g1_ref, b1_ref, wq_ref, wqp_ref, bq_ref,
                    wk_ref, bk_ref, wv_ref, bv_ref,
                    qtab_ref, qconst_ref, ksum_ref, kvrows_ref):
        xx = x_ref[...]                                         # (N, D) f32
        mu = jnp.mean(xx, axis=-1, keepdims=True)
        var = jnp.mean(jnp.square(xx - mu), axis=-1, keepdims=True)
        h = (xx - mu) * lax.rsqrt(var + 1e-5) * g1_ref[...] + b1_ref[...]
        hb = h.astype(bf16)

        # per-position query projections, stacked rows: Qtab[p*N + n] = h_n @ Wq[p]
        for p in range(K):                                      # K static & small
            qtab_ref[p * N:(p + 1) * N, :] = jnp.dot(
                hb, wq_ref[p], preferred_element_type=f32).astype(qtab_ref.dtype)

        hmean = jnp.mean(h, axis=0, keepdims=True).astype(bf16)  # (1, D)
        qconst_ref[...] = jnp.dot(hmean, wqp_ref[...],
                                  preferred_element_type=f32) + bq_ref[...]

        kf = jnp.maximum(jnp.dot(hb, wk_ref[...],
                                 preferred_element_type=f32) + bk_ref[...], 0.0)
        v = jnp.dot(hb, wv_ref[...], preferred_element_type=f32) + bv_ref[...]
        ksum_ref[...] = jnp.sum(kf, axis=0, keepdims=True)

        kfb = kf.astype(bf16)
        vb = v.astype(bf16)
        for hh in range(n_heads):                               # static, small
            kvrows_ref[hh * dqh:(hh + 1) * dqh, :] = lax.dot_general(
                kfb[:, hh * dqh:(hh + 1) * dqh], vb[:, hh * dvh:(hh + 1) * dvh],
                dimension_numbers=(((0,), (0,)), ((), ())),
                preferred_element_type=f32).astype(kvrows_ref.dtype)

    qtab, qconst, ksum, kvrows = pl.pallas_call(
        node_kernel,
        out_shape=(
            jax.ShapeDtypeStruct((K * N, DQ), bf16),   # stacked per-position q proj
            jax.ShapeDtypeStruct((1, DQ), f32),        # pooled query term + bias
            jax.ShapeDtypeStruct((1, DQ), f32),        # sum_n phi(k_n)
            jax.ShapeDtypeStruct((n_heads * dqh, dvh), bf16),   # per-head KV rows
        ),
        in_specs=[vmem] * 10,
        out_specs=(vmem, vmem, vmem, vmem),
    )(x, g1, b1, wq, wqp, bq, wk, bk, wv, bv)

    # glue (plain JAX, tiny): block-diagonal KV and 0/1 head-broadcast matrix so
    # the per-head attention becomes two full-width 128x128 matmuls in phase 2.
    kv_bd = jnp.zeros((DQ, DV), bf16)
    s_mat = jnp.zeros((DQ, DV), bf16)
    for hh in range(n_heads):
        kv_bd = kv_bd.at[hh * dqh:(hh + 1) * dqh, hh * dvh:(hh + 1) * dvh].set(
            kvrows[hh * dqh:(hh + 1) * dqh, :])
        s_mat = s_mat.at[hh * dqh:(hh + 1) * dqh, hh * dvh:(hh + 1) * dvh].set(1.0)

    # ---------------- phase 2: edge-level, gridded over E ---------------------
    def edge_kernel(idx_ref, qtab_ref, qconst_ref, ksum_ref, kvbd_ref, smat_ref,
                    wo_ref, bo_ref, g2_ref, b2_ref,
                    w1_ref, bff1_ref, w2_ref, bff2_ref, out_ref):
        te = out_ref.shape[0]
        idx = idx_ref[...]                                      # (te, K) int32

        # fused gather: one hoisted iota, K compares, ONE (te,K*N)@(K*N,DQ) matmul
        col = lax.broadcasted_iota(jnp.int32, (te, K * N), 1)
        onehot = (col == idx[:, 0:1]).astype(f32)
        for p in range(1, K):
            onehot = onehot + (col == (idx[:, p:p + 1] + p * N)).astype(f32)

        q_pre = jnp.dot(onehot.astype(bf16), qtab_ref[...],
                        preferred_element_type=f32)             # sum_p h[i_p]@Wq[p]
        q_pre = q_pre + qconst_ref[...]                         # pooled term + bias
        q_feat = jnp.maximum(q_pre, 0.0)                        # generalized-kernel phi

        numer = jnp.dot(q_feat.astype(bf16), kvbd_ref[...],
                        preferred_element_type=f32)             # (te, DV)
        denom = jnp.dot((q_feat * ksum_ref[...]).astype(bf16), smat_ref[...],
                        preferred_element_type=f32) + 1e-6      # (te, DV), per head
        att = numer / denom

        # attention output projection; residual=False -> this is the FFN input
        o = jnp.dot(att.astype(bf16), wo_ref[...],
                    preferred_element_type=f32) + bo_ref[...]   # (te, D)

        # FFN: LayerNorm -> Linear -> GELU -> Linear (dropout p=0) ; Add(o, ffn)
        mu = jnp.mean(o, axis=-1, keepdims=True)
        var = jnp.mean(jnp.square(o - mu), axis=-1, keepdims=True)
        oln = (o - mu) * lax.rsqrt(var + 1e-5) * g2_ref[...] + b2_ref[...]
        u = jnp.dot(oln.astype(bf16), w1_ref[...],
                    preferred_element_type=f32) + bff1_ref[...]
        u = jax.nn.gelu(u, approximate=True)
        y = jnp.dot(u.astype(bf16), w2_ref[...],
                    preferred_element_type=f32) + bff2_ref[...]
        out_ref[...] = (o + y).astype(out_ref.dtype)            # lane-dense store

    def rep(shape):   # replicated (same block every grid step), 2-D
        return pl.BlockSpec(shape, lambda e: (0, 0))

    cost = pl.CostEstimate(
        flops=2 * E * (K * N * DQ + 2 * DQ * DV + DV * D + 2 * D * F),
        transcendentals=E * F,
        bytes_accessed=4 * E * (K + D)
        + 2 * (K * N * DQ + 2 * DQ * DV + DV * D + 2 * D * F),
    )

    out = pl.pallas_call(
        edge_kernel,
        out_shape=jax.ShapeDtypeStruct((E, D), f32),
        grid=(E // tile_e,),
        in_specs=[
            pl.BlockSpec((tile_e, K), lambda e: (e, 0)),   # indices tile
            rep((K * N, DQ)),                              # Qtab
            rep((1, DQ)), rep((1, DQ)),                    # qconst, ksum
            rep((DQ, DV)), rep((DQ, DV)),                  # KV block-diag, S
            rep((DV, D)), rep((1, D)),                     # Wo, bo
            rep((1, D)), rep((1, D)),                      # FFN LN gamma/beta
            rep((D, F)), rep((1, F)),                      # W_ff1, b_ff1
            rep((F, D)), rep((1, D)),                      # W_ff2, b_ff2
        ],
        out_specs=pl.BlockSpec((tile_e, D), lambda e: (e, 0)),
        compiler_params=pltpu.CompilerParams(
            dimension_semantics=("parallel",)),
        cost_estimate=cost,
    )(indices, qtab, qconst, ksum, kv_bd, s_mat,
      wo, bo, g2, b2, w1, bff1, w2, bff2)
    return out


# --------------------------- pure-JAX reference ------------------------------
def enc_layer_reference(x, indices, params, *, n_heads):
    (g1, b1, wq, wqp, bq, wk, bk, wv, bv,
     wo, bo, g2, b2, w1, bff1, w2, bff2) = params
    bf16, f32 = jnp.bfloat16, jnp.float32
    N = x.shape[0]
    E, K = indices.shape
    DQ, DV = wk.shape[1], wv.shape[1]
    dqh, dvh = DQ // n_heads, DV // n_heads

    mu = x.mean(-1, keepdims=True)
    var = jnp.square(x - mu).mean(-1, keepdims=True)
    h = (x - mu) * lax.rsqrt(var + 1e-5) * g1 + b1
    hb = h.astype(bf16)

    qtab = jnp.concatenate(
        [jnp.dot(hb, wq[p], preferred_element_type=f32).astype(bf16)
         for p in range(K)], axis=0)
    qconst = jnp.dot(h.mean(0, keepdims=True).astype(bf16), wqp,
                     preferred_element_type=f32) + bq
    kf = jnp.maximum(jnp.dot(hb, wk, preferred_element_type=f32) + bk, 0.0)
    v = jnp.dot(hb, wv, preferred_element_type=f32) + bv
    ksum = kf.sum(0, keepdims=True)
    kfb, vb = kf.astype(bf16), v.astype(bf16)

    kv_bd = jnp.zeros((DQ, DV), bf16)
    s_mat = jnp.zeros((DQ, DV), bf16)
    for hh in range(n_heads):
        blk = lax.dot_general(kfb[:, hh * dqh:(hh + 1) * dqh],
                              vb[:, hh * dvh:(hh + 1) * dvh],
                              (((0,), (0,)), ((), ())),
                              preferred_element_type=f32).astype(bf16)
        kv_bd = kv_bd.at[hh * dqh:(hh + 1) * dqh, hh * dvh:(hh + 1) * dvh].set(blk)
        s_mat = s_mat.at[hh * dqh:(hh + 1) * dqh, hh * dvh:(hh + 1) * dvh].set(1.0)

    q_pre = jnp.zeros((E, DQ), f32)
    for p in range(K):
        q_pre = q_pre + qtab[p * N:(p + 1) * N][indices[:, p]].astype(f32)
    q_pre = q_pre + qconst
    q_feat = jnp.maximum(q_pre, 0.0)
    numer = jnp.dot(q_feat.astype(bf16), kv_bd, preferred_element_type=f32)
    denom = jnp.dot((q_feat * ksum).astype(bf16), s_mat,
                    preferred_element_type=f32) + 1e-6
    att = numer / denom
    o = jnp.dot(att.astype(bf16), wo, preferred_element_type=f32) + bo

    mu = o.mean(-1, keepdims=True)
    var = jnp.square(o - mu).mean(-1, keepdims=True)
    oln = (o - mu) * lax.rsqrt(var + 1e-5) * g2 + b2
    u = jax.nn.gelu(jnp.dot(oln.astype(bf16), w1, preferred_element_type=f32)
                    + bff1, approximate=True)
    y = jnp.dot(u.astype(bf16), w2, preferred_element_type=f32) + bff2
    return o + y


# --------------------------------- main ---------------------------------------
if __name__ == "__main__":
    # EncLayer(ord_in=1, ord_out=2, dim_in=128, dim_qk=128, dim_v=128,
    #          dim_ff=256, n_heads=4, att_cfg='generalized_kernel', dropout=0.0)
    # Small but hardware-friendly (lane-dense, MXU-aligned) sizes per review.
    N_NODES, N_EDGES, K_ORD = 64, 256, 2
    D_IN, D_QK, D_V, D_FF, HEADS = 128, 128, 128, 256, 4
    TILE_E = 128

    key = jax.random.PRNGKey(0)
    keys = jax.random.split(key, 20)
    f32, bf16 = jnp.float32, jnp.bfloat16

    def w(k, shape, scale=0.1):
        return (scale * jax.random.normal(k, shape, f32)).astype(bf16)

    x = jax.random.normal(keys[0], (N_NODES, D_IN), f32)

    # deterministic loop-free hyperedges (rows always have 2 distinct node ids)
    e_ar = jnp.arange(N_EDGES, dtype=jnp.int32)
    indices = jnp.stack([e_ar % N_NODES, (7 * e_ar + 3) % N_NODES], axis=1)
    _check_indices(np.asarray(indices), K_ORD)

    params = (
        1.0 + 0.1 * jax.random.normal(keys[1], (1, D_IN), f32),    # LN1 gamma
        0.1 * jax.random.normal(keys[2], (1, D_IN), f32),          # LN1 beta
        w(keys[3], (K_ORD, D_IN, D_QK)),                           # Wq[p] (1->k)
        w(keys[4], (D_IN, D_QK)),                                  # Wq pooled
        0.1 * jax.random.normal(keys[5], (1, D_QK), f32),          # bq
        w(keys[6], (D_IN, D_QK)),                                  # Wk
        0.1 * jax.random.normal(keys[7], (1, D_QK), f32),          # bk
        w(keys[8], (D_IN, D_V)),                                   # Wv
        0.1 * jax.random.normal(keys[9], (1, D_V), f32),           # bv
        w(keys[10], (D_V, D_IN)),                                  # Wo
        0.1 * jax.random.normal(keys[11], (1, D_IN), f32),         # bo
        1.0 + 0.1 * jax.random.normal(keys[12], (1, D_IN), f32),   # LN2 gamma
        0.1 * jax.random.normal(keys[13], (1, D_IN), f32),         # LN2 beta
        w(keys[14], (D_IN, D_FF)),                                 # W_ff1
        0.1 * jax.random.normal(keys[15], (1, D_FF), f32),         # b_ff1
        w(keys[16], (D_FF, D_IN)),                                 # W_ff2
        0.1 * jax.random.normal(keys[17], (1, D_IN), f32),         # b_ff2
    )

    out = enc_layer_forward(x, indices, params, n_heads=HEADS, tile_e=TILE_E)
    out = jax.block_until_ready(out)

    ref = enc_layer_reference(x, indices, params, n_heads=HEADS)
    # bf16 matmul operands (mirrored in the reference); 1e-2 absorbs rare
    # 1-ulp bf16 rounding differences between Mosaic and XLA accumulations.
    np.testing.assert_allclose(np.asarray(out), np.asarray(ref),
                               rtol=1e-2, atol=1e-2)
    print("KERNEL_OK")
</pallas_src>

<mosaic_0001>
module attributes {stable_mosaic.version = 11 : i64} {
  func.func @node_kernel(%arg0: memref<64x128xf32, #tpu.memory_space<vmem>>, %arg1: memref<1x128xf32, #tpu.memory_space<vmem>>, %arg2: memref<1x128xf32, #tpu.memory_space<vmem>>, %arg3: memref<2x128x128xbf16, #tpu.memory_space<vmem>>, %arg4: memref<128x128xbf16, #tpu.memory_space<vmem>>, %arg5: memref<1x128xf32, #tpu.memory_space<vmem>>, %arg6: memref<128x128xbf16, #tpu.memory_space<vmem>>, %arg7: memref<1x128xf32, #tpu.memory_space<vmem>>, %arg8: memref<128x128xbf16, #tpu.memory_space<vmem>>, %arg9: memref<1x128xf32, #tpu.memory_space<vmem>>, %arg10: memref<128x128xbf16, #tpu.memory_space<vmem>>, %arg11: memref<1x128xf32, #tpu.memory_space<vmem>>, %arg12: memref<1x128xf32, #tpu.memory_space<vmem>>, %arg13: memref<128x32xbf16, #tpu.memory_space<vmem>>) attributes {dimension_semantics = [], scalar_prefetch = 0 : i64, scratch_operands = 0 : i64, tpu.core_type = #tpu.core_type<tc>} {
    %c0 = arith.constant 0 : index
    %c0_0 = arith.constant 0 : index
    %0 = vector.load %arg0[%c0, %c0_0] : memref<64x128xf32, #tpu.memory_space<vmem>>, vector<64x128xf32>
    %cst = arith.constant dense<0.000000e+00> : vector<64xf32>
    %1 = vector.multi_reduction <add>, %0, %cst [1] : vector<64x128xf32> to vector<64xf32>
    %2 = vector.shape_cast %1 : vector<64xf32> to vector<64x1xf32>
    %cst_1 = arith.constant 1.280000e+02 : f32
    %3 = vector.broadcast %cst_1 : f32 to vector<64x1xf32>
    %4 = arith.divf %2, %3 : vector<64x1xf32>
    %5 = vector.broadcast %4 : vector<64x1xf32> to vector<64x128xf32>
    %6 = arith.subf %0, %5 : vector<64x128xf32>
    %7 = arith.mulf %6, %6 : vector<64x128xf32>
    %cst_2 = arith.constant dense<0.000000e+00> : vector<64xf32>
    %8 = vector.multi_reduction <add>, %7, %cst_2 [1] : vector<64x128xf32> to vector<64xf32>
    %9 = vector.shape_cast %8 : vector<64xf32> to vector<64x1xf32>
    %cst_3 = arith.constant 1.280000e+02 : f32
    %10 = vector.broadcast %cst_3 : f32 to vector<64x1xf32>
    %11 = arith.divf %9, %10 : vector<64x1xf32>
    %12 = vector.broadcast %4 : vector<64x1xf32> to vector<64x128xf32>
    %13 = arith.subf %0, %12 : vector<64x128xf32>
    %cst_4 = arith.constant 9.99999974E-6 : f32
    %14 = vector.broadcast %cst_4 : f32 to vector<64x1xf32>
    %15 = arith.addf %11, %14 : vector<64x1xf32>
    %16 = math.rsqrt %15 : vector<64x1xf32>
    %17 = vector.broadcast %16 : vector<64x1xf32> to vector<64x128xf32>
    %18 = arith.mulf %13, %17 : vector<64x128xf32>
    %c0_5 = arith.constant 0 : index
    %c0_6 = arith.constant 0 : index
    %19 = vector.load %arg1[%c0_5, %c0_6] : memref<1x128xf32, #tpu.memory_space<vmem>>, vector<1x128xf32>
    %20 = vector.broadcast %19 : vector<1x128xf32> to vector<64x128xf32>
    %21 = arith.mulf %18, %20 : vector<64x128xf32>
    %c0_7 = arith.constant 0 : index
    %c0_8 = arith.constant 0 : index
    %22 = vector.load %arg2[%c0_7, %c0_8] : memref<1x128xf32, #tpu.memory_space<vmem>>, vector<1x128xf32>
    %23 = vector.broadcast %22 : vector<1x128xf32> to vector<64x128xf32>
    %24 = arith.addf %21, %23 : vector<64x128xf32>
    %25 = arith.truncf %24 : vector<64x128xf32> to vector<64x128xbf16>
    %c0_9 = arith.constant 0 : index
    %c0_10 = arith.constant 0 : index
    %c0_11 = arith.constant 0 : index
    %26 = vector.load %arg3[%c0_9, %c0_10, %c0_11] : memref<2x128x128xbf16, #tpu.memory_space<vmem>>, vector<1x128x128xbf16>
    %27 = vector.shape_cast %26 : vector<1x128x128xbf16> to vector<128x128xbf16>
    %cst_12 = arith.constant dense<0.000000e+00> : vector<64x128xf32>
    %28 = tpu.matmul %25, %27, %cst_12 {dimension_numbers = #tpu.dot_dimension_numbers<[1], [0], [0], [1], [0, 0, 1, 1], [], []>} : vector<64x128xbf16>, vector<128x128xbf16>, vector<64x128xf32> -> vector<64x128xf32>
    %29 = arith.truncf %28 : vector<64x128xf32> to vector<64x128xbf16>
    %c0_13 = arith.constant 0 : index
    %c0_14 = arith.constant 0 : index
    %30 = vector.load %arg10[%c0_13, %c0_14] : memref<128x128xbf16, #tpu.memory_space<vmem>>, vector<64x128xbf16>
    tpu.vector_store %arg10[%c0_13, %c0_14], %29 {strides = array<i32>} : memref<128x128xbf16, #tpu.memory_space<vmem>>, vector<64x128xbf16>,
    %c1 = arith.constant 1 : index
    %c0_15 = arith.constant 0 : index
    %c0_16 = arith.constant 0 : index
    %31 = vector.load %arg3[%c1, %c0_15, %c0_16] : memref<2x128x128xbf16, #tpu.memory_space<vmem>>, vector<1x128x128xbf16>
    %32 = vector.shape_cast %31 : vector<1x128x128xbf16> to vector<128x128xbf16>
    %cst_17 = arith.constant dense<0.000000e+00> : vector<64x128xf32>
    %33 = tpu.matmul %25, %32, %cst_17 {dimension_numbers = #tpu.dot_dimension_numbers<[1], [0], [0], [1], [0, 0, 1, 1], [], []>} : vector<64x128xbf16>, vector<128x128xbf16>, vector<64x128xf32> -> vector<64x128xf32>
    %34 = arith.truncf %33 : vector<64x128xf32> to vector<64x128xbf16>
    %c64 = arith.constant 64 : index
    %c0_18 = arith.constant 0 : index
    %35 = vector.load %arg10[%c64, %c0_18] : memref<128x128xbf16, #tpu.memory_space<vmem>>, vector<64x128xbf16>
    tpu.vector_store %arg10[%c64, %c0_18], %34 {strides = array<i32>} : memref<128x128xbf16, #tpu.memory_space<vmem>>, vector<64x128xbf16>,
    %cst_19 = arith.constant dense<0.000000e+00> : vector<128xf32>
    %36 = vector.multi_reduction <add>, %24, %cst_19 [0] : vector<64x128xf32> to vector<128xf32>
    %37 = vector.shape_cast %36 : vector<128xf32> to vector<1x128xf32>
    %cst_20 = arith.constant 6.400000e+01 : f32
    %38 = vector.broadcast %cst_20 : f32 to vector<1x128xf32>
    %39 = arith.divf %37, %38 : vector<1x128xf32>
    %40 = arith.truncf %39 : vector<1x128xf32> to vector<1x128xbf16>
    %c0_21 = arith.constant 0 : index
    %c0_22 = arith.constant 0 : index
    %41 = vector.load %arg4[%c0_21, %c0_22] : memref<128x128xbf16, #tpu.memory_space<vmem>>, vector<128x128xbf16>
    %cst_23 = arith.constant dense<0.000000e+00> : vector<1x128xf32>
    %42 = tpu.matmul %40, %41, %cst_23 {dimension_numbers = #tpu.dot_dimension_numbers<[1], [0], [0], [1], [0, 0, 1, 1], [], []>} : vector<1x128xbf16>, vector<128x128xbf16>, vector<1x128xf32> -> vector<1x128xf32>
    %c0_24 = arith.constant 0 : index
    %c0_25 = arith.constant 0 : index
    %43 = vector.load %arg5[%c0_24, %c0_25] : memref<1x128xf32, #tpu.memory_space<vmem>>, vector<1x128xf32>
    %44 = arith.addf %42, %43 : vector<1x128xf32>
    %c0_26 = arith.constant 0 : index
    %c0_27 = arith.constant 0 : index
    %45 = vector.load %arg11[%c0_26, %c0_27] : memref<1x128xf32, #tpu.memory_space<vmem>>, vector<1x128xf32>
    tpu.vector_store %arg11[%c0_26, %c0_27], %44 {strides = array<i32>} : memref<1x128xf32, #tpu.memory_space<vmem>>, vector<1x128xf32>,
    %c0_28 = arith.constant 0 : index
    %c0_29 = arith.constant 0 : index
    %46 = vector.load %arg6[%c0_28, %c0_29] : memref<128x128xbf16, #tpu.memory_space<vmem>>, vector<128x128xbf16>
    %cst_30 = arith.constant dense<0.000000e+00> : vector<64x128xf32>
    %47 = tpu.matmul %25, %46, %cst_30 {dimension_numbers = #tpu.dot_dimension_numbers<[1], [0], [0], [1], [0, 0, 1, 1], [], []>} : vector<64x128xbf16>, vector<128x128xbf16>, vector<64x128xf32> -> vector<64x128xf32>
    %c0_31 = arith.constant 0 : index
    %c0_32 = arith.constant 0 : index
    %48 = vector.load %arg7[%c0_31, %c0_32] : memref<1x128xf32, #tpu.memory_space<vmem>>, vector<1x128xf32>
    %49 = vector.broadcast %48 : vector<1x128xf32> to vector<64x128xf32>
    %50 = arith.addf %47, %49 : vector<64x128xf32>
    %cst_33 = arith.constant 0.000000e+00 : f32
    %51 = vector.broadcast %cst_33 : f32 to vector<64x128xf32>
    %52 = arith.maximumf %50, %51 : vector<64x128xf32>
    %c0_34 = arith.constant 0 : index
    %c0_35 = arith.constant 0 : index
    %53 = vector.load %arg8[%c0_34, %c0_35] : memref<128x128xbf16, #tpu.memory_space<vmem>>, vector<128x128xbf16>
    %cst_36 = arith.constant dense<0.000000e+00> : vector<64x128xf32>
    %54 = tpu.matmul %25, %53, %cst_36 {dimension_numbers = #tpu.dot_dimension_numbers<[1], [0], [0], [1], [0, 0, 1, 1], [], []>} : vector<64x128xbf16>, vector<128x128xbf16>, vector<64x128xf32> -> vector<64x128xf32>
    %c0_37 = arith.constant 0 : index
    %c0_38 = arith.constant 0 : index
    %55 = vector.load %arg9[%c0_37, %c0_38] : memref<1x128xf32, #tpu.memory_space<vmem>>, vector<1x128xf32>
    %56 = vector.broadcast %55 : vector<1x128xf32> to vector<64x128xf32>
    %57 = arith.addf %54, %56 : vector<64x128xf32>
    %cst_39 = arith.constant dense<0.000000e+00> : vector<128xf32>
    %58 = vector.multi_reduction <add>, %52, %cst_39 [0] : vector<64x128xf32> to vector<128xf32>
    %59 = vector.shape_cast %58 : vector<128xf32> to vector<1x128xf32>
    %c0_40 = arith.constant 0 : index
    %c0_41 = arith.constant 0 : index
    %60 = vector.load %arg12[%c0_40, %c0_41] : memref<1x128xf32, #tpu.memory_space<vmem>>, vector<1x128xf32>
    tpu.vector_store %arg12[%c0_40, %c0_41], %59 {strides = array<i32>} : memref<1x128xf32, #tpu.memory_space<vmem>>, vector<1x128xf32>,
    %61 = arith.truncf %52 : vector<64x128xf32> to vector<64x128xbf16>
    %62 = arith.truncf %57 : vector<64x128xf32> to vector<64x128xbf16>
    %63 = vector.extract_strided_slice %61 {offsets = [0, 0], sizes = [64, 32], strides = [1, 1]} : vector<64x128xbf16> to vector<64x32xbf16>
    %64 = vector.extract_strided_slice %62 {offsets = [0, 0], sizes = [64, 32], strides = [1, 1]} : vector<64x128xbf16> to vector<64x32xbf16>
    %cst_42 = arith.constant dense<0.000000e+00> : vector<32x32xf32>
    %65 = tpu.matmul %63, %64, %cst_42 {dimension_numbers = #tpu.dot_dimension_numbers<[0], [0], [1], [1], [0, 1, 1, 1], [], []>} : vector<64x32xbf16>, vector<64x32xbf16>, vector<32x32xf32> -> vector<32x32xf32>
    %66 = arith.truncf %65 : vector<32x32xf32> to vector<32x32xbf16>
    %c0_43 = arith.constant 0 : index
    %c0_44 = arith.constant 0 : index
    %67 = vector.load %arg13[%c0_43, %c0_44] : memref<128x32xbf16, #tpu.memory_space<vmem>>, vector<32x32xbf16>
    tpu.vector_store %arg13[%c0_43, %c0_44], %66 {strides = array<i32>} : memref<128x32xbf16, #tpu.memory_space<vmem>>, vector<32x32xbf16>,
    %68 = vector.extract_strided_slice %61 {offsets = [0, 32], sizes = [64, 32], strides = [1, 1]} : vector<64x128xbf16> to vector<64x32xbf16>
    %69 = vector.extract_strided_slice %62 {offsets = [0, 32], sizes = [64, 32], strides = [1, 1]} : vector<64x128xbf16> to vector<64x32xbf16>
    %cst_45 = arith.constant dense<0.000000e+00> : vector<32x32xf32>
    %70 = tpu.matmul %68, %69, %cst_45 {dimension_numbers = #tpu.dot_dimension_numbers<[0], [0], [1], [1], [0, 1, 1, 1], [], []>} : vector<64x32xbf16>, vector<64x32xbf16>, vector<32x32xf32> -> vector<32x32xf32>
    %71 = arith.truncf %70 : vector<32x32xf32> to vector<32x32xbf16>
    %c32 = arith.constant 32 : index
    %c0_46 = arith.constant 0 : index
    %72 = vector.load %arg13[%c32, %c0_46] : memref<128x32xbf16, #tpu.memory_space<vmem>>, vector<32x32xbf16>
    tpu.vector_store %arg13[%c32, %c0_46], %71 {strides = array<i32>} : memref<128x32xbf16, #tpu.memory_space<vmem>>, vector<32x32xbf16>,
    %73 = vector.extract_strided_slice %61 {offsets = [0, 64], sizes = [64, 32], strides = [1, 1]} : vector<64x128xbf16> to vector<64x32xbf16>
    %74 = vector.extract_strided_slice %62 {offsets = [0, 64], sizes = [64, 32], strides = [1, 1]} : vector<64x128xbf16> to vector<64x32xbf16>
    %cst_47 = arith.constant dense<0.000000e+00> : vector<32x32xf32>
    %75 = tpu.matmul %73, %74, %cst_47 {dimension_numbers = #tpu.dot_dimension_numbers<[0], [0], [1], [1], [0, 1, 1, 1], [], []>} : vector<64x32xbf16>, vector<64x32xbf16>, vector<32x32xf32> -> vector<32x32xf32>
    %76 = arith.truncf %75 : vector<32x32xf32> to vector<32x32xbf16>
    %c64_48 = arith.constant 64 : index
    %c0_49 = arith.constant 0 : index
    %77 = vector.load %arg13[%c64_48, %c0_49] : memref<128x32xbf16, #tpu.memory_space<vmem>>, vector<32x32xbf16>
    tpu.vector_store %arg13[%c64_48, %c0_49], %76 {strides = array<i32>} : memref<128x32xbf16, #tpu.memory_space<vmem>>, vector<32x32xbf16>,
    %78 = vector.extract_strided_slice %61 {offsets = [0, 96], sizes = [64, 32], strides = [1, 1]} : vector<64x128xbf16> to vector<64x32xbf16>
    %79 = vector.extract_strided_slice %62 {offsets = [0, 96], sizes = [64, 32], strides = [1, 1]} : vector<64x128xbf16> to vector<64x32xbf16>
    %cst_50 = arith.constant dense<0.000000e+00> : vector<32x32xf32>
    %80 = tpu.matmul %78, %79, %cst_50 {dimension_numbers = #tpu.dot_dimension_numbers<[0], [0], [1], [1], [0, 1, 1, 1], [], []>} : vector<64x32xbf16>, vector<64x32xbf16>, vector<32x32xf32> -> vector<32x32xf32>
    %81 = arith.truncf %80 : vector<32x32xf32> to vector<32x32xbf16>
    %c96 = arith.constant 96 : index
    %c0_51 = arith.constant 0 : index
    %82 = vector.load %arg13[%c96, %c0_51] : memref<128x32xbf16, #tpu.memory_space<vmem>>, vector<32x32xbf16>
    tpu.vector_store %arg13[%c96, %c0_51], %81 {strides = array<i32>} : memref<128x32xbf16, #tpu.memory_space<vmem>>, vector<32x32xbf16>,
    return
  }
}

</mosaic_0001>

<llo_original>
// kernel: tpu_custom_call.1
$region0: #{tpu_custom_call.1}
  #allocation0 [shape = 'u32[]', space=smem, size = 0x4, offset = 0x4, fixed_abs, tag = 'smem constant byte address 0x4 - core index']
  #allocation1 [shape = 'u32[72,128]{1,0:T(1,128)}', space=vmem, size = 0x9000, scoped, tag = 'internal scratch']
  %s0 = inlined_call_operand.hbm [shape: f32[64,128], index: 0, kind: input, shape index: {}]
  %s1 = inlined_call_operand.hbm [shape: f32[1,128], index: 1, kind: input, shape index: {}]
  %s2 = inlined_call_operand.vmem [shape: f32[1,128], index: 2, kind: input, shape index: {}]
  %s3 = inlined_call_operand.hbm [shape: bf16[2,128,128], index: 3, kind: input, shape index: {}]
  %s4 = inlined_call_operand.hbm [shape: bf16[128,128], index: 4, kind: input, shape index: {}]
  %s5 = inlined_call_operand.vmem [shape: f32[1,128], index: 5, kind: input, shape index: {}]
  %s6 = inlined_call_operand.hbm [shape: bf16[128,128], index: 6, kind: input, shape index: {}]
  %s7 = inlined_call_operand.vmem [shape: f32[1,128], index: 7, kind: input, shape index: {}]
  %s8 = inlined_call_operand.hbm [shape: bf16[128,128], index: 8, kind: input, shape index: {}]
  %s9 = inlined_call_operand.vmem [shape: f32[1,128], index: 9, kind: input, shape index: {}]
  %s10 = inlined_call_operand.hbm [shape: bf16[128,128], index: 10, kind: output, shape index: {0}]
  %s11 = inlined_call_operand.hbm [shape: f32[1,128], index: 11, kind: output, shape index: {1}]
  %s12 = inlined_call_operand.hbm [shape: f32[1,128], index: 12, kind: output, shape index: {2}]
  %s13 = inlined_call_operand.vmem [shape: bf16[128,32], index: 13, kind: output, shape index: {3}]
  %14 = xla_tuple %s10, %s11, %s12, %s13
  %s15 = sld [smem:[#allocation0]]
  $region98: #{tpu_custom_call.1} parent=0
    _
  %s17 = ssub.s32 1, %s15
  %s18 = scalar_select 0, %s17, %s15
  $region1: #{tpu_custom_call.1} parent=0
    #allocation2 [shape = 'u8[32768]{0}', space=vmem, size = 0x8000, scoped, tag = 'input window, operand 0, single buffered']
    #allocation3 [shape = 's32[1]{0}', space=sflag, size = 0x4, scoped, tag = 'scoped memory for tpu_custom_call.1']
    #allocation4 [shape = 's32[1]{0}', space=sflag, size = 0x4, scoped, tag = 'scoped memory for tpu_custom_call.1']
    #allocation5 [shape = 'u8[512]{0}', space=vmem, size = 0x400, scoped, tag = 'input window, operand 1, single buffered']
    #allocation6 [shape = 's32[1]{0}', space=sflag, size = 0x4, scoped, tag = 'scoped memory for tpu_custom_call.1']
    #allocation7 [shape = 'u8[65536]{0}', space=vmem, size = 0x10000, scoped, tag = 'input window, operand 3, single buffered']
    #allocation8 [shape = 'u8[32768]{0}', space=vmem, size = 0x8000, scoped, tag = 'input window, operand 4, single buffered']
    #allocation9 [shape = 's32[1]{0}', space=sflag, size = 0x4, scoped, tag = 'scoped memory for tpu_custom_call.1']
    #allocation10 [shape = 'u8[32768]{0}', space=vmem, size = 0x8000, scoped, tag = 'input window, operand 6, single buffered']
    #allocation11 [shape = 'u8[32768]{0}', space=vmem, size = 0x8000, scoped, tag = 'input window, operand 8, single buffered']
    #allocation12 [shape = 's32[1]{0}', space=sflag, size = 0x4, scoped, tag = 'scoped memory for tpu_custom_call.1']
    #allocation13 [shape = 'u8[32768]{0}', space=vmem, size = 0x8000, scoped, tag = 'output window, operand 0, single buffered']
    #allocation14 [shape = 'u8[512]{0}', space=vmem, size = 0x400, scoped, tag = 'output window, operand 1, single buffered']
    #allocation15 [shape = 's32[1]{0}', space=sflag, size = 0x4, scoped, tag = 'scoped memory for tpu_custom_call.1']
    #allocation16 [shape = 'u8[512]{0}', space=vmem, size = 0x400, scoped, tag = 'output window, operand 2, single buffered']
    %19 = vsyncpa [#allocation3], 0
    %20 = vsyncpa [#allocation6], 0
    %21 = vsyncpa [#allocation9], 0
    %22 = vsyncpa [#allocation12], 0
    %23 = vsyncpa [#allocation4], 0
    %24 = vsyncpa [#allocation15], 0
    // Predicated region
    $region2: #{tpu_custom_call.1} parent=1 // pred_check
      _
    $region3: #{tpu_custom_call.1} parent=1 // pred_check_branch
      %26 = sbr.rel (0) target = $region5
    $region4: #{tpu_custom_call.1} parent=1 // pred_region
      %28 = vsyncadd [#allocation3], 0
      %s29 = sshll.u32 %s0, 4
      %s30 = int_to_ptr.hbm [resolvable:$true] %s29
      %s31 = sshll.u32 [#allocation2], 4
      %s32 = int_to_ptr.vmem [resolvable:$true] %s31
      %37 = dma.hbm_to_vmem [thread:$0]  %s30, 1024, %s32, [#allocation3], 128, 128, 8
    $region5: #{tpu_custom_call.1} parent=1 // pred_fallthru
      _
    // Predicated region
    $region6: #{tpu_custom_call.1} parent=1 // pred_check
      _
    $region7: #{tpu_custom_call.1} parent=1 // pred_check_branch
      %39 = sbr.rel (0) target = $region9
    $region8: #{tpu_custom_call.1} parent=1 // pred_region
      %41 = vsyncadd [#allocation6], 0
      %s43 = sshll.u32 %s1, 4
      %s44 = int_to_ptr.hbm [resolvable:$true] %s43
      %s45 = sshll.u32 [#allocation5], 4
      %s46 = int_to_ptr.vmem [resolvable:$true] %s45
      %48 = dma.hbm_to_vmem [thread:$0]  %s44, 16, %s46, [#allocation6]
    $region9: #{tpu_custom_call.1} parent=1 // pred_fallthru
      _
    // Predicated region
    $region10: #{tpu_custom_call.1} parent=1 // pred_check
      _
    $region11: #{tpu_custom_call.1} parent=1 // pred_check_branch
      %50 = sbr.rel (0) target = $region13
    $region12: #{tpu_custom_call.1} parent=1 // pred_region
      _
    $region13: #{tpu_custom_call.1} parent=1 // pred_fallthru
      _
    // Predicated region
    $region14: #{tpu_custom_call.1} parent=1 // pred_check
      _
    $region15: #{tpu_custom_call.1} parent=1 // pred_check_branch
      %52 = sbr.rel (0) target = $region17
    $region16: #{tpu_custom_call.1} parent=1 // pred_region
      %54 = vsyncadd [#allocation6], 0
      %s55 = sshll.u32 %s3, 4
      %s56 = int_to_ptr.hbm [resolvable:$true] %s55
      %s57 = sshll.u32 [#allocation7], 4
      %s58 = int_to_ptr.vmem [resolvable:$true] %s57
      %63 = dma.hbm_to_vmem [thread:$0]  %s56, 2048, %s58, [#allocation6], 64, 64, 4
    $region17: #{tpu_custom_call.1} parent=1 // pred_fallthru
      _
    // Predicated region
    $region18: #{tpu_custom_call.1} parent=1 // pred_check
      _
    $region19: #{tpu_custom_call.1} parent=1 // pred_check_branch
      %65 = sbr.rel (0) target = $region21
    $region20: #{tpu_custom_call.1} parent=1 // pred_region
      %67 = vsyncadd [#allocation9], 0
      %s68 = sshll.u32 %s4, 4
      %s69 = int_to_ptr.hbm [resolvable:$true] %s68
      %s70 = sshll.u32 [#allocation8], 4
      %s71 = int_to_ptr.vmem [resolvable:$true] %s70
      %76 = dma.hbm_to_vmem [thread:$0]  %s69, 1024, %s71, [#allocation9], 64, 64, 4
    $region21: #{tpu_custom_call.1} parent=1 // pred_fallthru
      _
    // Predicated region
    $region22: #{tpu_custom_call.1} parent=1 // pred_check
      _
    $region23: #{tpu_custom_call.1} parent=1 // pred_check_branch
      %78 = sbr.rel (0) target = $region25
    $region24: #{tpu_custom_call.1} parent=1 // pred_region
      _
    $region25: #{tpu_custom_call.1} parent=1 // pred_fallthru
      _
    // Predicated region
    $region26: #{tpu_custom_call.1} parent=1 // pred_check
      _
    $region27: #{tpu_custom_call.1} parent=1 // pred_check_branch
      %80 = sbr.rel (0) target = $region29
    $region28: #{tpu_custom_call.1} parent=1 // pred_region
      %82 = vsyncadd [#allocation9], 0
      %s83 = sshll.u32 %s6, 4
      %s84 = int_to_ptr.hbm [resolvable:$true] %s83
      %s85 = sshll.u32 [#allocation10], 4
      %s86 = int_to_ptr.vmem [resolvable:$true] %s85
      %91 = dma.hbm_to_vmem [thread:$0]  %s84, 1024, %s86, [#allocation9], 64, 64, 4
    $region29: #{tpu_custom_call.1} parent=1 // pred_fallthru
      _
    // Predicated region
    $region30: #{tpu_custom_call.1} parent=1 // pred_check
      _
    $region31: #{tpu_custom_call.1} parent=1 // pred_check_branch
      %93 = sbr.rel (0) target = $region33
    $region32: #{tpu_custom_call.1} parent=1 // pred_region
      _
    $region33: #{tpu_custom_call.1} parent=1 // pred_fallthru
      _
    // Predicated region
    $region34: #{tpu_custom_call.1} parent=1 // pred_check
      _
    $region35: #{tpu_custom_call.1} parent=1 // pred_check_branch
      %95 = sbr.rel (0) target = $region37
    $region36: #{tpu_custom_call.1} parent=1 // pred_region
      %97 = vsyncadd [#allocation12], 0
      %s98 = sshll.u32 %s8, 4
      %s99 = int_to_ptr.hbm [resolvable:$true] %s98
      %s100 = sshll.u32 [#allocation11], 4
      %s101 = int_to_ptr.vmem [resolvable:$true] %s100
      %106 = dma.hbm_to_vmem [thread:$0]  %s99, 1024, %s101, [#allocation12], 64, 64, 4
    $region37: #{tpu_custom_call.1} parent=1 // pred_fallthru
      _
    // Predicated region
    $region38: #{tpu_custom_call.1} parent=1 // pred_check
      _
    $region39: #{tpu_custom_call.1} parent=1 // pred_check_branch
      %108 = sbr.rel (0) target = $region41
    $region40: #{tpu_custom_call.1} parent=1 // pred_region
      _
    $region41: #{tpu_custom_call.1} parent=1 // pred_fallthru
      _
    // Predicated region
    $region42: #{tpu_custom_call.1} parent=1 // pred_check
      _
    $region43: #{tpu_custom_call.1} parent=1 // pred_check_branch
      %110 = sbr.rel (0) target = $region45
    $region44: #{tpu_custom_call.1} parent=1 // pred_region
      %112 = dma.done [#allocation3], 1024
    $region45: #{tpu_custom_call.1} parent=1 // pred_fallthru
      _
    // Predicated region
    $region46: #{tpu_custom_call.1} parent=1 // pred_check
      _
    $region47: #{tpu_custom_call.1} parent=1 // pred_check_branch
      %114 = sbr.rel (0) target = $region49
    $region48: #{tpu_custom_call.1} parent=1 // pred_region
      %116 = dma.done [#allocation6], 16
    $region49: #{tpu_custom_call.1} parent=1 // pred_fallthru
      _
    // Predicated region
    $region50: #{tpu_custom_call.1} parent=1 // pred_check
      _
    $region51: #{tpu_custom_call.1} parent=1 // pred_check_branch
      %118 = sbr.rel (0) target = $region53
    $region52: #{tpu_custom_call.1} parent=1 // pred_region
      %120 = dma.done [#allocation6], 2048
    $region53: #{tpu_custom_call.1} parent=1 // pred_fallthru
      _
    // Predicated region
    $region54: #{tpu_custom_call.1} parent=1 // pred_check
      _
    $region55: #{tpu_custom_call.1} parent=1 // pred_check_branch
      %122 = sbr.rel (0) target = $region57
    $region56: #{tpu_custom_call.1} parent=1 // pred_region
      %124 = dma.done [#allocation9], 1024
    $region57: #{tpu_custom_call.1} parent=1 // pred_fallthru
      _
    // Predicated region
    $region58: #{tpu_custom_call.1} parent=1 // pred_check
      _
    $region59: #{tpu_custom_call.1} parent=1 // pred_check_branch
      %126 = sbr.rel (0) target = $region61
    $region60: #{tpu_custom_call.1} parent=1 // pred_region
      %128 = dma.done [#allocation9], 1024
    $region61: #{tpu_custom_call.1} parent=1 // pred_fallthru
      _
    // Predicated region
    $region62: #{tpu_custom_call.1} parent=1 // pred_check
      _
    $region63: #{tpu_custom_call.1} parent=1 // pred_check_branch
      %130 = sbr.rel (0) target = $region65
    $region64: #{tpu_custom_call.1} parent=1 // pred_region
      %132 = dma.done [#allocation12], 1024
    $region65: #{tpu_custom_call.1} parent=1 // pred_fallthru
      _
    %v134 = vld [vmem:[#allocation2] sm:$0xff]
    %v135 = vld [vmem:[#allocation2 + $0x8] sm:$0xff]
    %v136 = vld [vmem:[#allocation2 + $0x10] sm:$0xff]
    %v137 = vld [vmem:[#allocation2 + $0x18] sm:$0xff]
    %v138 = vld [vmem:[#allocation2 + $0x20] sm:$0xff]
    %v139 = vld [vmem:[#allocation2 + $0x28] sm:$0xff]
    %v140 = vld [vmem:[#allocation2 + $0x30] sm:$0xff]
    %v141 = vld [vmem:[#allocation2 + $0x38] sm:$0xff]
    %142 = vadd.xlane.f32.xlu0 %v134
    %v143 = vpop.xlane.xlu0 %142
    %144 = vadd.xlane.f32.xlu0 %v135
    %v145 = vpop.xlane.xlu0 %144
    %146 = vadd.xlane.f32.xlu0 %v136
    %v147 = vpop.xlane.xlu0 %146
    %148 = vadd.xlane.f32.xlu0 %v137
    %v149 = vpop.xlane.xlu0 %148
    %150 = vadd.xlane.f32.xlu0 %v138
    %v151 = vpop.xlane.xlu0 %150
    %152 = vadd.xlane.f32.xlu0 %v139
    %v153 = vpop.xlane.xlu0 %152
    %154 = vadd.xlane.f32.xlu0 %v140
    %v155 = vpop.xlane.xlu0 %154
    %156 = vadd.xlane.f32.xlu0 %v141
    %v157 = vpop.xlane.xlu0 %156
    %v158 = vrcp.pop 128.0
    %v159 = vmul.f32 128.0, %v158
    %v160 = vsub.f32 1.0, %v159
    %v161 = vmul.f32 %v158, %v160
    %v162 = vadd.f32 %v158, %v161
    %vm163 = vweird.f32 %v158
    %v164 = vsel %vm163, %v158, %v162
    %v165 = vmul.f32 %v143, %v164
    %v166 = vmul.f32 %v145, %v164
    %v167 = vmul.f32 %v147, %v164
    %v168 = vmul.f32 %v149, %v164
    %v169 = vmul.f32 %v151, %v164
    %v170 = vmul.f32 %v153, %v164
    %v171 = vmul.f32 %v155, %v164
    %v172 = vmul.f32 %v157, %v164
    %v173 = vsub.f32 %v134, %v165
    %v174 = vsub.f32 %v135, %v166
    %v175 = vsub.f32 %v136, %v167
    %v176 = vsub.f32 %v137, %v168
    %v177 = vsub.f32 %v138, %v169
    %v178 = vsub.f32 %v139, %v170
    %v179 = vsub.f32 %v140, %v171
    %v180 = vsub.f32 %v141, %v172
    %v181 = vmul.f32 %v173, %v173
    %v182 = vmul.f32 %v174, %v174
    %v183 = vmul.f32 %v175, %v175
    %v184 = vmul.f32 %v176, %v176
    %v185 = vmul.f32 %v177, %v177
    %v186 = vmul.f32 %v178, %v178
    %v187 = vmul.f32 %v179, %v179
    %v188 = vmul.f32 %v180, %v180
    %189 = vadd.xlane.f32.xlu0 %v181
    %v190 = vpop.xlane.xlu0 %189
    %191 = vadd.xlane.f32.xlu0 %v182
    %v192 = vpop.xlane.xlu0 %191
    %193 = vadd.xlane.f32.xlu0 %v183
    %v194 = vpop.xlane.xlu0 %193
    %195 = vadd.xlane.f32.xlu0 %v184
    %v196 = vpop.xlane.xlu0 %195
    %197 = vadd.xlane.f32.xlu0 %v185
    %v198 = vpop.xlane.xlu0 %197
    %199 = vadd.xlane.f32.xlu0 %v186
    %v200 = vpop.xlane.xlu0 %199
    %201 = vadd.xlane.f32.xlu0 %v187
    %v202 = vpop.xlane.xlu0 %201
    %203 = vadd.xlane.f32.xlu0 %v188
    %v204 = vpop.xlane.xlu0 %203
    %v205 = vmul.f32 %v190, %v164
    %v206 = vmul.f32 %v192, %v164
    %v207 = vmul.f32 %v194, %v164
    %v208 = vmul.f32 %v196, %v164
    %v209 = vmul.f32 %v198, %v164
    %v210 = vmul.f32 %v200, %v164
    %v211 = vmul.f32 %v202, %v164
    %v212 = vmul.f32 %v204, %v164
    %v213 = vadd.f32 %v205, 1e-05
    %v214 = vadd.f32 %v206, 1e-05
    %v215 = vadd.f32 %v207, 1e-05
    %v216 = vadd.f32 %v208, 1e-05
    %v217 = vadd.f32 %v209, 1e-05
    %v218 = vadd.f32 %v210, 1e-05
    %v219 = vadd.f32 %v211, 1e-05
    %v220 = vadd.f32 %v212, 1e-05
    %v221 = vrsqrt.pop %v213
    %v222 = vmul.f32 %v221, %v213
    %v223 = vmul.f32 %v222, %v221
    %v224 = vmul.f32 0.5, %v223
    %v225 = vsub.f32 1.5, %v224
    %v226 = vmul.f32 %v221, %v225
    %vm227 = vweird.f32 %v213
    %vm228 = vweird.f32 %v221
    %vm229 = vmor %vm227, %vm228
    %v230 = vsel %vm229, %v221, %v226
    %v231 = vrsqrt.pop %v214
    %v232 = vmul.f32 %v231, %v214
    %v233 = vmul.f32 %v232, %v231
    %v234 = vmul.f32 0.5, %v233
    %v235 = vsub.f32 1.5, %v234
    %v236 = vmul.f32 %v231, %v235
    %vm237 = vweird.f32 %v214
    %vm238 = vweird.f32 %v231
    %vm239 = vmor %vm237, %vm238
    %v240 = vsel %vm239, %v231, %v236
    %v241 = vrsqrt.pop %v215
    %v242 = vmul.f32 %v241, %v215
    %v243 = vmul.f32 %v242, %v241
    %v244 = vmul.f32 0.5, %v243
    %v245 = vsub.f32 1.5, %v244
    %v246 = vmul.f32 %v241, %v245
    %vm247 = vweird.f32 %v215
    %vm248 = vweird.f32 %v241
    %vm249 = vmor %vm247, %vm248
    %v250 = vsel %vm249, %v241, %v246
    %v251 = vrsqrt.pop %v216
    %v252 = vmul.f32 %v251, %v216
    %v253 = vmul.f32 %v252, %v251
    %v254 = vmul.f32 0.5, %v253
    %v255 = vsub.f32 1.5, %v254
    %v256 = vmul.f32 %v251, %v255
    %vm257 = vweird.f32 %v216
    %vm258 = vweird.f32 %v251
    %vm259 = vmor %vm257, %vm258
    %v260 = vsel %vm259, %v251, %v256
    %v261 = vrsqrt.pop %v217
    %v262 = vmul.f32 %v261, %v217
    %v263 = vmul.f32 %v262, %v261
    %v264 = vmul.f32 0.5, %v263
    %v265 = vsub.f32 1.5, %v264
    %v266 = vmul.f32 %v261, %v265
    %vm267 = vweird.f32 %v217
    %vm268 = vweird.f32 %v261
    %vm269 = vmor %vm267, %vm268
    %v270 = vsel %vm269, %v261, %v266
    %v271 = vrsqrt.pop %v218
    %v272 = vmul.f32 %v271, %v218
    %v273 = vmul.f32 %v272, %v271
    %v274 = vmul.f32 0.5, %v273
    %v275 = vsub.f32 1.5, %v274
    %v276 = vmul.f32 %v271, %v275
    %vm277 = vweird.f32 %v218
    %vm278 = vweird.f32 %v271
    %vm279 = vmor %vm277, %vm278
    %v280 = vsel %vm279, %v271, %v276
    %v281 = vrsqrt.pop %v219
    %v282 = vmul.f32 %v281, %v219
    %v283 = vmul.f32 %v282, %v281
    %v284 = vmul.f32 0.5, %v283
    %v285 = vsub.f32 1.5, %v284
    %v286 = vmul.f32 %v281, %v285
    %vm287 = vweird.f32 %v219
    %vm288 = vweird.f32 %v281
    %vm289 = vmor %vm287, %vm288
    %v290 = vsel %vm289, %v281, %v286
    %v291 = vrsqrt.pop %v220
    %v292 = vmul.f32 %v291, %v220
    %v293 = vmul.f32 %v292, %v291
    %v294 = vmul.f32 0.5, %v293
    %v295 = vsub.f32 1.5, %v294
    %v296 = vmul.f32 %v291, %v295
    %vm297 = vweird.f32 %v220
    %vm298 = vweird.f32 %v291
    %vm299 = vmor %vm297, %vm298
    %v300 = vsel %vm299, %v291, %v296
    %v301 = vmul.f32 %v173, %v230
    %v302 = vmul.f32 %v174, %v240
    %v303 = vmul.f32 %v175, %v250
    %v304 = vmul.f32 %v176, %v260
    %v305 = vmul.f32 %v177, %v270
    %v306 = vmul.f32 %v178, %v280
    %v307 = vmul.f32 %v179, %v290
    %v308 = vmul.f32 %v180, %v300
    %v309 = vld [vmem:[#allocation5] sm:$0x1]
    %v311 = vperm.slane %v309, 0
    %v313 = vmul.f32 %v301, %v311
    %v314 = vmul.f32 %v302, %v311
    %v315 = vmul.f32 %v303, %v311
    %v316 = vmul.f32 %v304, %v311
    %v317 = vmul.f32 %v305, %v311
    %v318 = vmul.f32 %v306, %v311
    %v319 = vmul.f32 %v307, %v311
    %v320 = vmul.f32 %v308, %v311
    %v321 = vld [vmem:[%s2] sm:$0x1]
    %v323 = vperm.slane %v321, 0
    %v325 = vadd.f32 %v313, %v323
    %v326 = vadd.f32 %v314, %v323
    %v327 = vadd.f32 %v315, %v323
    %v328 = vadd.f32 %v316, %v323
    %v329 = vadd.f32 %v317, %v323
    %v330 = vadd.f32 %v318, %v323
    %v331 = vadd.f32 %v319, %v323
    %v332 = vadd.f32 %v320, %v323
    %v333 = vpack.c.bf16 %v326, %v325
    %v334 = vpack.c.bf16 %v328, %v327
    %v335 = vpack.c.bf16 %v330, %v329
    %v336 = vpack.c.bf16 %v332, %v331
    %v337 = vld [vmem:[#allocation7] sm:$0xf]
    %v338 = vld [vmem:[#allocation7 + $0x4] sm:$0xf]
    %v339 = vld [vmem:[#allocation7 + $0x8] sm:$0xf]
    %v340 = vld [vmem:[#allocation7 + $0xc] sm:$0xf]
    %v341 = vld [vmem:[#allocation7 + $0x10] sm:$0xf]
    %v342 = vld [vmem:[#allocation7 + $0x14] sm:$0xf]
    %v343 = vld [vmem:[#allocation7 + $0x18] sm:$0xf]
    %v344 = vld [vmem:[#allocation7 + $0x1c] sm:$0xf]
    %v345 = vld [vmem:[#allocation7 + $0x20] sm:$0xf]
    %v346 = vld [vmem:[#allocation7 + $0x24] sm:$0xf]
    %v347 = vld [vmem:[#allocation7 + $0x28] sm:$0xf]
    %v348 = vld [vmem:[#allocation7 + $0x2c] sm:$0xf]
    %v349 = vld [vmem:[#allocation7 + $0x30] sm:$0xf]
    %v350 = vld [vmem:[#allocation7 + $0x34] sm:$0xf]
    %v351 = vld [vmem:[#allocation7 + $0x38] sm:$0xf]
    %v352 = vld [vmem:[#allocation7 + $0x3c] sm:$0xf]
    %v369 = vunpack.c.l.b16 %v337
    %v370 = vunpack.c.l.b16 %v338
    %v371 = vunpack.c.l.b16 %v339
    %v372 = vunpack.c.l.b16 %v340
    %v373 = vunpack.c.l.b16 %v341
    %v374 = vunpack.c.l.b16 %v342
    %v375 = vunpack.c.l.b16 %v343
    %v376 = vunpack.c.l.b16 %v344
    %v377 = vunpack.c.l.b16 %v345
    %v378 = vunpack.c.l.b16 %v346
    %v379 = vunpack.c.l.b16 %v347
    %v380 = vunpack.c.l.b16 %v348
    %v381 = vunpack.c.l.b16 %v349
    %v382 = vunpack.c.l.b16 %v350
    %v383 = vunpack.c.l.b16 %v351
    %v384 = vunpack.c.l.b16 %v352
    %v385 = vpack.c.b16 %v370, %v369
    %v386 = vpack.c.b16 %v372, %v371
    %v387 = vpack.c.b16 %v374, %v373
    %v388 = vpack.c.b16 %v376, %v375
    %v389 = vpack.c.b16 %v378, %v377
    %v390 = vpack.c.b16 %v380, %v379
    %v391 = vpack.c.b16 %v382, %v381
    %v392 = vpack.c.b16 %v384, %v383
    %401 = vmatpush.bf16.msra.mxu0 %v392
    %402 = vmatpush.bf16.msra.mxu0 %v391
    %403 = vmatpush.bf16.msra.mxu0 %v390
    %404 = vmatpush.bf16.msra.mxu0 %v389
    %405 = vmatpush.bf16.msra.mxu0 %v388
    %406 = vmatpush.bf16.msra.mxu0 %v387
    %407 = vmatpush.bf16.msra.mxu0 %v386
    %408 = vmatpush.bf16.msra.mxu0 %v385
    %409 = vmatmul.bf16.gmra.mxu0 %v333
    %v410 = vpop.f32.mrf.mxu0
    %v411 = vadd.f32 0.0, %v410
    %v412 = vpop.f32.mrf.mxu0
    %v413 = vadd.f32 0.0, %v412
    %414 = vmatmul.bf16.gmra.mxu0 %v334
    %v415 = vpop.f32.mrf.mxu0
    %v416 = vadd.f32 0.0, %v415
    %v417 = vpop.f32.mrf.mxu0
    %v418 = vadd.f32 0.0, %v417
    %419 = vmatmul.bf16.gmra.mxu0 %v335
    %v420 = vpop.f32.mrf.mxu0
    %v421 = vadd.f32 0.0, %v420
    %v422 = vpop.f32.mrf.mxu0
    %v423 = vadd.f32 0.0, %v422
    %424 = vmatmul.bf16.gmra.mxu0 %v336
    %v425 = vpop.f32.mrf.mxu0
    %v426 = vadd.f32 0.0, %v425
    %v427 = vpop.f32.mrf.mxu0
    %v428 = vadd.f32 0.0, %v427
    %429 = vdwg.mxu0
    %v430 = vpack.c.bf16 %v411, %v411
    %v431 = vpack.c.bf16 %v413, %v413
    %v432 = vpack.c.bf16 %v416, %v416
    %v433 = vpack.c.bf16 %v418, %v418
    %v434 = vpack.c.bf16 %v421, %v421
    %v435 = vpack.c.bf16 %v423, %v423
    %v436 = vpack.c.bf16 %v426, %v426
    %v437 = vpack.c.bf16 %v428, %v428
    %438 = vst [vmem:[#allocation13] sm:$0xf] %v430
    %439 = vst [vmem:[#allocation13 + $0x4] sm:$0xf] %v431
    %440 = vst [vmem:[#allocation13 + $0x8] sm:$0xf] %v432
    %441 = vst [vmem:[#allocation13 + $0xc] sm:$0xf] %v433
    %442 = vst [vmem:[#allocation13 + $0x10] sm:$0xf] %v434
    %443 = vst [vmem:[#allocation13 + $0x14] sm:$0xf] %v435
    %444 = vst [vmem:[#allocation13 + $0x18] sm:$0xf] %v436
    %445 = vst [vmem:[#allocation13 + $0x1c] sm:$0xf] %v437
    %s446 = scalar_lea.vmem [#allocation7], 64
    %v447 = vld [vmem:[%s446] sm:$0xf]
    %v448 = vld [vmem:[%s446 + $0x4] sm:$0xf]
    %v449 = vld [vmem:[%s446 + $0x8] sm:$0xf]
    %v450 = vld [vmem:[%s446 + $0xc] sm:$0xf]
    %v451 = vld [vmem:[%s446 + $0x10] sm:$0xf]
    %v452 = vld [vmem:[%s446 + $0x14] sm:$0xf]
    %v453 = vld [vmem:[%s446 + $0x18] sm:$0xf]
    %v454 = vld [vmem:[%s446 + $0x1c] sm:$0xf]
    %v455 = vld [vmem:[%s446 + $0x20] sm:$0xf]
    %v456 = vld [vmem:[%s446 + $0x24] sm:$0xf]
    %v457 = vld [vmem:[%s446 + $0x28] sm:$0xf]
    %v458 = vld [vmem:[%s446 + $0x2c] sm:$0xf]
    %v459 = vld [vmem:[%s446 + $0x30] sm:$0xf]
    %v460 = vld [vmem:[%s446 + $0x34] sm:$0xf]
    %v461 = vld [vmem:[%s446 + $0x38] sm:$0xf]
    %v462 = vld [vmem:[%s446 + $0x3c] sm:$0xf]
    %v479 = vunpack.c.l.b16 %v447
    %v480 = vunpack.c.l.b16 %v448
    %v481 = vunpack.c.l.b16 %v449
    %v482 = vunpack.c.l.b16 %v450
    %v483 = vunpack.c.l.b16 %v451
    %v484 = vunpack.c.l.b16 %v452
    %v485 = vunpack.c.l.b16 %v453
    %v486 = vunpack.c.l.b16 %v454
    %v487 = vunpack.c.l.b16 %v455
    %v488 = vunpack.c.l.b16 %v456
    %v489 = vunpack.c.l.b16 %v457
    %v490 = vunpack.c.l.b16 %v458
    %v491 = vunpack.c.l.b16 %v459
    %v492 = vunpack.c.l.b16 %v460
    %v493 = vunpack.c.l.b16 %v461
    %v494 = vunpack.c.l.b16 %v462
    %v495 = vpack.c.b16 %v480, %v479
    %v496 = vpack.c.b16 %v482, %v481
    %v497 = vpack.c.b16 %v484, %v483
    %v498 = vpack.c.b16 %v486, %v485
    %v499 = vpack.c.b16 %v488, %v487
    %v500 = vpack.c.b16 %v490, %v489
    %v501 = vpack.c.b16 %v492, %v491
    %v502 = vpack.c.b16 %v494, %v493
    %511 = vmatpush.bf16.msra.mxu0 %v502
    %512 = vmatpush.bf16.msra.mxu0 %v501
    %513 = vmatpush.bf16.msra.mxu0 %v500
    %514 = vmatpush.bf16.msra.mxu0 %v499
    %515 = vmatpush.bf16.msra.mxu0 %v498
    %516 = vmatpush.bf16.msra.mxu0 %v497
    %517 = vmatpush.bf16.msra.mxu0 %v496
    %518 = vmatpush.bf16.msra.mxu0 %v495
    %519 = vmatmul.bf16.gmra.mxu0 %v333
    %v520 = vpop.f32.mrf.mxu0
    %v521 = vadd.f32 0.0, %v520
    %v522 = vpop.f32.mrf.mxu0
    %v523 = vadd.f32 0.0, %v522
    %524 = vmatmul.bf16.gmra.mxu0 %v334
    %v525 = vpop.f32.mrf.mxu0
    %v526 = vadd.f32 0.0, %v525
    %v527 = vpop.f32.mrf.mxu0
    %v528 = vadd.f32 0.0, %v527
    %529 = vmatmul.bf16.gmra.mxu0 %v335
    %v530 = vpop.f32.mrf.mxu0
    %v531 = vadd.f32 0.0, %v530
    %v532 = vpop.f32.mrf.mxu0
    %v533 = vadd.f32 0.0, %v532
    %534 = vmatmul.bf16.gmra.mxu0 %v336
    %v535 = vpop.f32.mrf.mxu0
    %v536 = vadd.f32 0.0, %v535
    %v537 = vpop.f32.mrf.mxu0
    %v538 = vadd.f32 0.0, %v537
    %539 = vdwg.mxu0
    %v540 = vpack.c.bf16 %v521, %v521
    %v541 = vpack.c.bf16 %v523, %v523
    %v542 = vpack.c.bf16 %v526, %v526
    %v543 = vpack.c.bf16 %v528, %v528
    %v544 = vpack.c.bf16 %v531, %v531
    %v545 = vpack.c.bf16 %v533, %v533
    %v546 = vpack.c.bf16 %v536, %v536
    %v547 = vpack.c.bf16 %v538, %v538
    %548 = vst [vmem:[#allocation13 + $0x20] sm:$0xf] %v540
    %549 = vst [vmem:[#allocation13 + $0x24] sm:$0xf] %v541
    %550 = vst [vmem:[#allocation13 + $0x28] sm:$0xf] %v542
    %551 = vst [vmem:[#allocation13 + $0x2c] sm:$0xf] %v543
    %552 = vst [vmem:[#allocation13 + $0x30] sm:$0xf] %v544
    %553 = vst [vmem:[#allocation13 + $0x34] sm:$0xf] %v545
    %554 = vst [vmem:[#allocation13 + $0x38] sm:$0xf] %v546
    %555 = vst [vmem:[#allocation13 + $0x3c] sm:$0xf] %v547
    %v556 = vadd.f32 %v325, %v326
    %v557 = vadd.f32 %v556, %v327
    %v558 = vadd.f32 %v557, %v328
    %v559 = vadd.f32 %v558, %v329
    %v560 = vadd.f32 %v559, %v330
    %v561 = vadd.f32 %v560, %v331
    %v562 = vadd.f32 %v561, %v332
    %v563 = vrot.slane %v562, 4
    %v564 = vadd.f32 %v562, %v563
    %v565 = vrot.slane %v564, 2
    %v566 = vadd.f32 %v564, %v565
    %v567 = vrot.slane %v566, 1
    %v568 = vadd.f32 %v566, %v567
    %v569 = vrcp.pop 64.0
    %v570 = vmul.f32 64.0, %v569
    %v571 = vsub.f32 1.0, %v570
    %v572 = vmul.f32 %v569, %v571
    %v573 = vadd.f32 %v569, %v572
    %vm574 = vweird.f32 %v569
    %v575 = vsel %vm574, %v569, %v573
    %v576 = vmul.f32 %v568, %v575
    %v577 = vpack.c.bf16 %v576, %v576
    %v578 = vld [vmem:[#allocation8] sm:$0xf]
    %v579 = vld [vmem:[#allocation8 + $0x4] sm:$0xf]
    %v580 = vld [vmem:[#allocation8 + $0x8] sm:$0xf]
    %v581 = vld [vmem:[#allocation8 + $0xc] sm:$0xf]
    %v582 = vld [vmem:[#allocation8 + $0x10] sm:$0xf]
    %v583 = vld [vmem:[#allocation8 + $0x14] sm:$0xf]
    %v584 = vld [vmem:[#allocation8 + $0x18] sm:$0xf]
    %v585 = vld [vmem:[#allocation8 + $0x1c] sm:$0xf]
    %v586 = vld [vmem:[#allocation8 + $0x20] sm:$0xf]
    %v587 = vld [vmem:[#allocation8 + $0x24] sm:$0xf]
    %v588 = vld [vmem:[#allocation8 + $0x28] sm:$0xf]
    %v589 = vld [vmem:[#allocation8 + $0x2c] sm:$0xf]
    %v590 = vld [vmem:[#allocation8 + $0x30] sm:$0xf]
    %v591 = vld [vmem:[#allocation8 + $0x34] sm:$0xf]
    %v592 = vld [vmem:[#allocation8 + $0x38] sm:$0xf]
    %v593 = vld [vmem:[#allocation8 + $0x3c] sm:$0xf]
    %v594 = vld [vmem:[%s5] sm:$0x1]
    %v611 = vunpack.c.l.b16 %v578
    %v612 = vunpack.c.l.b16 %v579
    %v613 = vunpack.c.l.b16 %v580
    %v614 = vunpack.c.l.b16 %v581
    %v615 = vunpack.c.l.b16 %v582
    %v616 = vunpack.c.l.b16 %v583
    %v617 = vunpack.c.l.b16 %v584
    %v618 = vunpack.c.l.b16 %v585
    %v619 = vunpack.c.l.b16 %v586
    %v620 = vunpack.c.l.b16 %v587
    %v621 = vunpack.c.l.b16 %v588
    %v622 = vunpack.c.l.b16 %v589
    %v623 = vunpack.c.l.b16 %v590
    %v624 = vunpack.c.l.b16 %v591
    %v625 = vunpack.c.l.b16 %v592
    %v626 = vunpack.c.l.b16 %v593
    %v627 = vpack.c.b16 %v612, %v611
    %v628 = vpack.c.b16 %v614, %v613
    %v629 = vpack.c.b16 %v616, %v615
    %v630 = vpack.c.b16 %v618, %v617
    %v631 = vpack.c.b16 %v620, %v619
    %v632 = vpack.c.b16 %v622, %v621
    %v633 = vpack.c.b16 %v624, %v623
    %v634 = vpack.c.b16 %v626, %v625
    %643 = vmatpush.bf16.msra.mxu0 %v634
    %644 = vmatpush.bf16.msra.mxu0 %v633
    %645 = vmatpush.bf16.msra.mxu0 %v632
    %646 = vmatpush.bf16.msra.mxu0 %v631
    %647 = vmatpush.bf16.msra.mxu0 %v630
    %648 = vmatpush.bf16.msra.mxu0 %v629
    %649 = vmatpush.bf16.msra.mxu0 %v628
    %650 = vmatpush.bf16.msra.mxu0 %v627
    %651 = vmatmul.bf16.gmra.mxu0 %v577
    %v652 = vpop.f32.mrf.mxu0
    %v653 = vadd.f32 %v594, %v652
    %v654 = vpop.f32.mrf.mxu0
    %655 = vdwg.mxu0
    %656 = vst [vmem:[#allocation14] sm:$0x1] %v653
    %v657 = vld [vmem:[#allocation10] sm:$0xf]
    %v658 = vld [vmem:[#allocation10 + $0x4] sm:$0xf]
    %v659 = vld [vmem:[#allocation10 + $0x8] sm:$0xf]
    %v660 = vld [vmem:[#allocation10 + $0xc] sm:$0xf]
    %v661 = vld [vmem:[#allocation10 + $0x10] sm:$0xf]
    %v662 = vld [vmem:[#allocation10 + $0x14] sm:$0xf]
    %v663 = vld [vmem:[#allocation10 + $0x18] sm:$0xf]
    %v664 = vld [vmem:[#allocation10 + $0x1c] sm:$0xf]
    %v665 = vld [vmem:[#allocation10 + $0x20] sm:$0xf]
    %v666 = vld [vmem:[#allocation10 + $0x24] sm:$0xf]
    %v667 = vld [vmem:[#allocation10 + $0x28] sm:$0xf]
    %v668 = vld [vmem:[#allocation10 + $0x2c] sm:$0xf]
    %v669 = vld [vmem:[#allocation10 + $0x30] sm:$0xf]
    %v670 = vld [vmem:[#allocation10 + $0x34] sm:$0xf]
    %v671 = vld [vmem:[#allocation10 + $0x38] sm:$0xf]
    %v672 = vld [vmem:[#allocation10 + $0x3c] sm:$0xf]
    %v673 = vld [vmem:[%s7] sm:$0x1]
    %v675 = vperm.slane %v673, 0
    %v693 = vunpack.c.l.b16 %v657
    %v694 = vunpack.c.l.b16 %v658
    %v695 = vunpack.c.l.b16 %v659
    %v696 = vunpack.c.l.b16 %v660
    %v697 = vunpack.c.l.b16 %v661
    %v698 = vunpack.c.l.b16 %v662
    %v699 = vunpack.c.l.b16 %v663
    %v700 = vunpack.c.l.b16 %v664
    %v701 = vunpack.c.l.b16 %v665
    %v702 = vunpack.c.l.b16 %v666
    %v703 = vunpack.c.l.b16 %v667
    %v704 = vunpack.c.l.b16 %v668
    %v705 = vunpack.c.l.b16 %v669
    %v706 = vunpack.c.l.b16 %v670
    %v707 = vunpack.c.l.b16 %v671
    %v708 = vunpack.c.l.b16 %v672
    %v709 = vpack.c.b16 %v694, %v693
    %v710 = vpack.c.b16 %v696, %v695
    %v711 = vpack.c.b16 %v698, %v697
    %v712 = vpack.c.b16 %v700, %v699
    %v713 = vpack.c.b16 %v702, %v701
    %v714 = vpack.c.b16 %v704, %v703
    %v715 = vpack.c.b16 %v706, %v705
    %v716 = vpack.c.b16 %v708, %v707
    %725 = vmatpush.bf16.msra.mxu0 %v716
    %726 = vmatpush.bf16.msra.mxu0 %v715
    %727 = vmatpush.bf16.msra.mxu0 %v714
    %728 = vmatpush.bf16.msra.mxu0 %v713
    %729 = vmatpush.bf16.msra.mxu0 %v712
    %730 = vmatpush.bf16.msra.mxu0 %v711
    %731 = vmatpush.bf16.msra.mxu0 %v710
    %732 = vmatpush.bf16.msra.mxu0 %v709
    %733 = vmatmul.bf16.gmra.mxu0 %v333
    %v734 = vpop.f32.mrf.mxu0
    %v735 = vadd.f32 %v675, %v734
    %v736 = vpop.f32.mrf.mxu0
    %v737 = vadd.f32 %v675, %v736
    %738 = vmatmul.bf16.gmra.mxu0 %v334
    %v739 = vpop.f32.mrf.mxu0
    %v740 = vadd.f32 %v675, %v739
    %v741 = vpop.f32.mrf.mxu0
    %v742 = vadd.f32 %v675, %v741
    %743 = vmatmul.bf16.gmra.mxu0 %v335
    %v744 = vpop.f32.mrf.mxu0
    %v745 = vadd.f32 %v675, %v744
    %v746 = vpop.f32.mrf.mxu0
    %v747 = vadd.f32 %v675, %v746
    %748 = vmatmul.bf16.gmra.mxu0 %v336
    %v749 = vpop.f32.mrf.mxu0
    %v750 = vadd.f32 %v675, %v749
    %v751 = vpop.f32.mrf.mxu0
    %v752 = vadd.f32 %v675, %v751
    %753 = vdwg.mxu0
    %v754 = vmax.f32 %v735, 0.0
    %v755 = vmax.f32 %v737, 0.0
    %v756 = vmax.f32 %v740, 0.0
    %v757 = vmax.f32 %v742, 0.0
    %v758 = vmax.f32 %v745, 0.0
    %v759 = vmax.f32 %v747, 0.0
    %v760 = vmax.f32 %v750, 0.0
    %v761 = vmax.f32 %v752, 0.0
    %v762 = vld [vmem:[#allocation11] sm:$0xf]
    %v763 = vld [vmem:[#allocation11 + $0x4] sm:$0xf]
    %v764 = vld [vmem:[#allocation11 + $0x8] sm:$0xf]
    %v765 = vld [vmem:[#allocation11 + $0xc] sm:$0xf]
    %v766 = vld [vmem:[#allocation11 + $0x10] sm:$0xf]
    %v767 = vld [vmem:[#allocation11 + $0x14] sm:$0xf]
    %v768 = vld [vmem:[#allocation11 + $0x18] sm:$0xf]
    %v769 = vld [vmem:[#allocation11 + $0x1c] sm:$0xf]
    %v770 = vld [vmem:[#allocation11 + $0x20] sm:$0xf]
    %v771 = vld [vmem:[#allocation11 + $0x24] sm:$0xf]
    %v772 = vld [vmem:[#allocation11 + $0x28] sm:$0xf]
    %v773 = vld [vmem:[#allocation11 + $0x2c] sm:$0xf]
    %v774 = vld [vmem:[#allocation11 + $0x30] sm:$0xf]
    %v775 = vld [vmem:[#allocation11 + $0x34] sm:$0xf]
    %v776 = vld [vmem:[#allocation11 + $0x38] sm:$0xf]
    %v777 = vld [vmem:[#allocation11 + $0x3c] sm:$0xf]
    %v778 = vld [vmem:[%s9] sm:$0x1]
    %v780 = vperm.slane %v778, 0
    %v798 = vunpack.c.l.b16 %v762
    %v799 = vunpack.c.l.b16 %v763
    %v800 = vunpack.c.l.b16 %v764
    %v801 = vunpack.c.l.b16 %v765
    %v802 = vunpack.c.l.b16 %v766
    %v803 = vunpack.c.l.b16 %v767
    %v804 = vunpack.c.l.b16 %v768
    %v805 = vunpack.c.l.b16 %v769
    %v806 = vunpack.c.l.b16 %v770
    %v807 = vunpack.c.l.b16 %v771
    %v808 = vunpack.c.l.b16 %v772
    %v809 = vunpack.c.l.b16 %v773
    %v810 = vunpack.c.l.b16 %v774
    %v811 = vunpack.c.l.b16 %v775
    %v812 = vunpack.c.l.b16 %v776
    %v813 = vunpack.c.l.b16 %v777
    %v814 = vpack.c.b16 %v799, %v798
    %v815 = vpack.c.b16 %v801, %v800
    %v816 = vpack.c.b16 %v803, %v802
    %v817 = vpack.c.b16 %v805, %v804
    %v818 = vpack.c.b16 %v807, %v806
    %v819 = vpack.c.b16 %v809, %v808
    %v820 = vpack.c.b16 %v811, %v810
    %v821 = vpack.c.b16 %v813, %v812
    %830 = vmatpush.bf16.msra.mxu0 %v821
    %831 = vmatpush.bf16.msra.mxu0 %v820
    %832 = vmatpush.bf16.msra.mxu0 %v819
    %833 = vmatpush.bf16.msra.mxu0 %v818
    %834 = vmatpush.bf16.msra.mxu0 %v817
    %835 = vmatpush.bf16.msra.mxu0 %v816
    %836 = vmatpush.bf16.msra.mxu0 %v815
    %837 = vmatpush.bf16.msra.mxu0 %v814
    %838 = vmatmul.bf16.gmra.mxu0 %v333
    %v839 = vpop.f32.mrf.mxu0
    %v840 = vadd.f32 %v780, %v839
    %v841 = vpop.f32.mrf.mxu0
    %v842 = vadd.f32 %v780, %v841
    %843 = vmatmul.bf16.gmra.mxu0 %v334
    %v844 = vpop.f32.mrf.mxu0
    %v845 = vadd.f32 %v780, %v844
    %v846 = vpop.f32.mrf.mxu0
    %v847 = vadd.f32 %v780, %v846
    %848 = vmatmul.bf16.gmra.mxu0 %v335
    %v849 = vpop.f32.mrf.mxu0
    %v850 = vadd.f32 %v780, %v849
    %v851 = vpop.f32.mrf.mxu0
    %v852 = vadd.f32 %v780, %v851
    %853 = vmatmul.bf16.gmra.mxu0 %v336
    %v854 = vpop.f32.mrf.mxu0
    %v855 = vadd.f32 %v780, %v854
    %v856 = vpop.f32.mrf.mxu0
    %v857 = vadd.f32 %v780, %v856
    %858 = vdwg.mxu0
    %v859 = vadd.f32 %v754, %v755
    %v860 = vadd.f32 %v859, %v756
    %v861 = vadd.f32 %v860, %v757
    %v862 = vadd.f32 %v861, %v758
    %v863 = vadd.f32 %v862, %v759
    %v864 = vadd.f32 %v863, %v760
    %v865 = vadd.f32 %v864, %v761
    %v866 = vrot.slane %v865, 4
    %v867 = vadd.f32 %v865, %v866
    %v868 = vrot.slane %v867, 2
    %v869 = vadd.f32 %v867, %v868
    %v870 = vrot.slane %v869, 1
    %v871 = vadd.f32 %v869, %v870
    %872 = vst [vmem:[#allocation16] sm:$0x1] %v871
    %v873 = vpack.c.bf16 %v754, %v754
    %v874 = vpack.c.bf16 %v755, %v755
    %v875 = vpack.c.bf16 %v756, %v756
    %v876 = vpack.c.bf16 %v757, %v757
    %v877 = vpack.c.bf16 %v758, %v758
    %v878 = vpack.c.bf16 %v759, %v759
    %v879 = vpack.c.bf16 %v760, %v760
    %v880 = vpack.c.bf16 %v761, %v761
    %v881 = vpack.c.bf16 %v840, %v840
    %v882 = vpack.c.bf16 %v842, %v842
    %v883 = vpack.c.bf16 %v845, %v845
    %v884 = vpack.c.bf16 %v847, %v847
    %v885 = vpack.c.bf16 %v850, %v850
    %v886 = vpack.c.bf16 %v852, %v852
    %v887 = vpack.c.bf16 %v855, %v855
    %v888 = vpack.c.bf16 %v857, %v857
    %v897 = vunpack.c.l.b16 %v873
    %v898 = vunpack.c.l.b16 %v874
    %v899 = vunpack.c.l.b16 %v875
    %v900 = vunpack.c.l.b16 %v876
    %v901 = vunpack.c.l.b16 %v877
    %v902 = vunpack.c.l.b16 %v878
    %v903 = vunpack.c.l.b16 %v879
    %v904 = vunpack.c.l.b16 %v880
    %v905 = vpack.c.b16 %v898, %v897
    %v906 = vpack.c.b16 %v900, %v899
    %v907 = vpack.c.b16 %v902, %v901
    %v908 = vpack.c.b16 %v904, %v903
    %913 = vxpose.xlu0.c.b16.start [1/8] %v905, 128
    %914 = vxpose.xlu0.c.b16.cont [2/8] %v906, 128
    %915 = vxpose.xlu0.c.b16.cont [3/8] %v907, 128
    %916 = vxpose.xlu0.c.b16.cont [4/8] %v908, 128
    %917 = vxpose.xlu0.c.b16.cont [5/8] 0, 128
    %918 = vxpose.xlu0.c.b16.cont [6/8] 0, 128
    %919 = vxpose.xlu0.c.b16.cont [7/8] 0, 128
    %920 = vxpose.xlu0.c.b16.end [8/8] 0, 128
    %v921 = vpop.trf.xlu0
    %v922 = vpop.trf.xlu0
    %v923 = vpop.trf.xlu0
    %v924 = vpop.trf.xlu0
    %v925 = vpop.trf.xlu0
    %v926 = vpop.trf.xlu0
    %v927 = vpop.trf.xlu0
    %v928 = vpop.trf.xlu0
    %v937 = vunpack.c.l.b16 %v881
    %v938 = vunpack.c.l.b16 %v882
    %v939 = vunpack.c.l.b16 %v883
    %v940 = vunpack.c.l.b16 %v884
    %v941 = vunpack.c.l.b16 %v885
    %v942 = vunpack.c.l.b16 %v886
    %v943 = vunpack.c.l.b16 %v887
    %v944 = vunpack.c.l.b16 %v888
    %v945 = vpack.c.b16 %v938, %v937
    %v946 = vpack.c.b16 %v940, %v939
    %v947 = vpack.c.b16 %v942, %v941
    %v948 = vpack.c.b16 %v944, %v943
    %vm953 = vcmask 523264
    %v955 = vsel %vm953, %v921, 0
    %v958 = vsel %vm953, %v922, 0
    %960 = vmatpush.bf16.msra.mxu0 0
    %961 = vmatpush.bf16.msra.mxu0 0
    %962 = vmatpush.bf16.msra.mxu0 0
    %963 = vmatpush.bf16.msra.mxu0 0
    %964 = vmatpush.bf16.msra.mxu0 %v948
    %965 = vmatpush.bf16.msra.mxu0 %v947
    %966 = vmatpush.bf16.msra.mxu0 %v946
    %967 = vmatpush.bf16.msra.mxu0 %v945
    %968 = vmatmul.bf16.gmra.mxu0 %v955
    %v969 = vpop.f32.mrf.mxu0
    %v970 = vadd.f32 0.0, %v969
    %v971 = vpop.f32.mrf.mxu0
    %v972 = vadd.f32 0.0, %v971
    %973 = vmatmul.bf16.gmra.mxu0 %v958
    %v974 = vpop.f32.mrf.mxu0
    %v975 = vadd.f32 0.0, %v974
    %v976 = vpop.f32.mrf.mxu0
    %v977 = vadd.f32 0.0, %v976
    %978 = vdwg.mxu0
    %v979 = vpack.c.bf16 %v970, %v970
    %v980 = vpack.c.bf16 %v972, %v972
    %v981 = vpack.c.bf16 %v975, %v975
    %v982 = vpack.c.bf16 %v977, %v977
    %vm983 = vcmask 257024
    %984 = vst.msk [vmem:[%s13] sm:$0xf] %vm983, %v979
    %985 = vst.msk [vmem:[%s13 + $0x4] sm:$0xf] %vm983, %v980
    %986 = vst.msk [vmem:[%s13 + $0x8] sm:$0xf] %vm983, %v981
    %987 = vst.msk [vmem:[%s13 + $0xc] sm:$0xf] %vm983, %v982
    %988 = vrot.lane.b32.xlu0 %v905, 96
    %v989 = vpop.permute.xlu0 %988
    %990 = vrot.lane.b32.xlu0 %v906, 96
    %v991 = vpop.permute.xlu0 %990
    %992 = vrot.lane.b32.xlu0 %v907, 96
    %v993 = vpop.permute.xlu0 %992
    %994 = vrot.lane.b32.xlu0 %v908, 96
    %v995 = vpop.permute.xlu0 %994
    %1000 = vxpose.xlu0.c.b16.start [1/8] %v989, 128
    %1001 = vxpose.xlu0.c.b16.cont [2/8] %v991, 128
    %1002 = vxpose.xlu0.c.b16.cont [3/8] %v993, 128
    %1003 = vxpose.xlu0.c.b16.cont [4/8] %v995, 128
    %1004 = vxpose.xlu0.c.b16.cont [5/8] 0, 128
    %1005 = vxpose.xlu0.c.b16.cont [6/8] 0, 128
    %1006 = vxpose.xlu0.c.b16.cont [7/8] 0, 128
    %1007 = vxpose.xlu0.c.b16.end [8/8] 0, 128
    %v1008 = vpop.trf.xlu0
    %v1009 = vpop.trf.xlu0
    %v1010 = vpop.trf.xlu0
    %v1011 = vpop.trf.xlu0
    %v1012 = vpop.trf.xlu0
    %v1013 = vpop.trf.xlu0
    %v1014 = vpop.trf.xlu0
    %v1015 = vpop.trf.xlu0
    %1016 = vrot.lane.b32.xlu0 %v945, 96
    %v1017 = vpop.permute.xlu0 %1016
    %1018 = vrot.lane.b32.xlu0 %v946, 96
    %v1019 = vpop.permute.xlu0 %1018
    %1020 = vrot.lane.b32.xlu0 %v947, 96
    %v1021 = vpop.permute.xlu0 %1020
    %1022 = vrot.lane.b32.xlu0 %v948, 96
    %v1023 = vpop.permute.xlu0 %1022
    %v1029 = vsel %vm953, %v1008, 0
    %v1032 = vsel %vm953, %v1009, 0
    %1034 = vmatpush.bf16.msra.mxu0 0
    %1035 = vmatpush.bf16.msra.mxu0 0
    %1036 = vmatpush.bf16.msra.mxu0 0
    %1037 = vmatpush.bf16.msra.mxu0 0
    %1038 = vmatpush.bf16.msra.mxu0 %v1023
    %1039 = vmatpush.bf16.msra.mxu0 %v1021
    %1040 = vmatpush.bf16.msra.mxu0 %v1019
    %1041 = vmatpush.bf16.msra.mxu0 %v1017
    %1042 = vmatmul.bf16.gmra.mxu0 %v1029
    %v1043 = vpop.f32.mrf.mxu0
    %v1044 = vadd.f32 0.0, %v1043
    %v1045 = vpop.f32.mrf.mxu0
    %v1046 = vadd.f32 0.0, %v1045
    %1047 = vmatmul.bf16.gmra.mxu0 %v1032
    %v1048 = vpop.f32.mrf.mxu0
    %v1049 = vadd.f32 0.0, %v1048
    %v1050 = vpop.f32.mrf.mxu0
    %v1051 = vadd.f32 0.0, %v1050
    %1052 = vdwg.mxu0
    %v1053 = vpack.c.bf16 %v1044, %v1044
    %v1054 = vpack.c.bf16 %v1046, %v1046
    %v1055 = vpack.c.bf16 %v1049, %v1049
    %v1056 = vpack.c.bf16 %v1051, %v1051
    %1057 = vst.msk [vmem:[%s13 + $0x10] sm:$0xf] %vm983, %v1053
    %1058 = vst.msk [vmem:[%s13 + $0x14] sm:$0xf] %vm983, %v1054
    %1059 = vst.msk [vmem:[%s13 + $0x18] sm:$0xf] %vm983, %v1055
    %1060 = vst.msk [vmem:[%s13 + $0x1c] sm:$0xf] %vm983, %v1056
    %1061 = vrot.lane.b32.xlu0 %v905, 64
    %v1062 = vpop.permute.xlu0 %1061
    %1063 = vrot.lane.b32.xlu0 %v906, 64
    %v1064 = vpop.permute.xlu0 %1063
    %1065 = vrot.lane.b32.xlu0 %v907, 64
    %v1066 = vpop.permute.xlu0 %1065
    %1067 = vrot.lane.b32.xlu0 %v908, 64
    %v1068 = vpop.permute.xlu0 %1067
    %1073 = vxpose.xlu0.c.b16.start [1/8] %v1062, 128
    %1074 = vxpose.xlu0.c.b16.cont [2/8] %v1064, 128
    %1075 = vxpose.xlu0.c.b16.cont [3/8] %v1066, 128
    %1076 = vxpose.xlu0.c.b16.cont [4/8] %v1068, 128
    %1077 = vxpose.xlu0.c.b16.cont [5/8] 0, 128
    %1078 = vxpose.xlu0.c.b16.cont [6/8] 0, 128
    %1079 = vxpose.xlu0.c.b16.cont [7/8] 0, 128
    %1080 = vxpose.xlu0.c.b16.end [8/8] 0, 128
    %v1081 = vpop.trf.xlu0
    %v1082 = vpop.trf.xlu0
    %v1083 = vpop.trf.xlu0
    %v1084 = vpop.trf.xlu0
    %v1085 = vpop.trf.xlu0
    %v1086 = vpop.trf.xlu0
    %v1087 = vpop.trf.xlu0
    %v1088 = vpop.trf.xlu0
    %1089 = vrot.lane.b32.xlu0 %v945, 64
    %v1090 = vpop.permute.xlu0 %1089
    %1091 = vrot.lane.b32.xlu0 %v946, 64
    %v1092 = vpop.permute.xlu0 %1091
    %1093 = vrot.lane.b32.xlu0 %v947, 64
    %v1094 = vpop.permute.xlu0 %1093
    %1095 = vrot.lane.b32.xlu0 %v948, 64
    %v1096 = vpop.permute.xlu0 %1095
    %v1102 = vsel %vm953, %v1081, 0
    %v1105 = vsel %vm953, %v1082, 0
    %1107 = vmatpush.bf16.msra.mxu0 0
    %1108 = vmatpush.bf16.msra.mxu0 0
    %1109 = vmatpush.bf16.msra.mxu0 0
    %1110 = vmatpush.bf16.msra.mxu0 0
    %1111 = vmatpush.bf16.msra.mxu0 %v1096
    %1112 = vmatpush.bf16.msra.mxu0 %v1094
    %1113 = vmatpush.bf16.msra.mxu0 %v1092
    %1114 = vmatpush.bf16.msra.mxu0 %v1090
    %1115 = vmatmul.bf16.gmra.mxu0 %v1102
    %v1116 = vpop.f32.mrf.mxu0
    %v1117 = vadd.f32 0.0, %v1116
    %v1118 = vpop.f32.mrf.mxu0
    %v1119 = vadd.f32 0.0, %v1118
    %1120 = vmatmul.bf16.gmra.mxu0 %v1105
    %v1121 = vpop.f32.mrf.mxu0
    %v1122 = vadd.f32 0.0, %v1121
    %v1123 = vpop.f32.mrf.mxu0
    %v1124 = vadd.f32 0.0, %v1123
    %1125 = vdwg.mxu0
    %v1126 = vpack.c.bf16 %v1117, %v1117
    %v1127 = vpack.c.bf16 %v1119, %v1119
    %v1128 = vpack.c.bf16 %v1122, %v1122
    %v1129 = vpack.c.bf16 %v1124, %v1124
    %1130 = vst.msk [vmem:[%s13 + $0x20] sm:$0xf] %vm983, %v1126
    %1131 = vst.msk [vmem:[%s13 + $0x24] sm:$0xf] %vm983, %v1127
    %1132 = vst.msk [vmem:[%s13 + $0x28] sm:$0xf] %vm983, %v1128
    %1133 = vst.msk [vmem:[%s13 + $0x2c] sm:$0xf] %vm983, %v1129
    %1134 = vrot.lane.b32.xlu0 %v905, 32
    %v1135 = vpop.permute.xlu0 %1134
    %1136 = vrot.lane.b32.xlu0 %v906, 32
    %v1137 = vpop.permute.xlu0 %1136
    %1138 = vrot.lane.b32.xlu0 %v907, 32
    %v1139 = vpop.permute.xlu0 %1138
    %1140 = vrot.lane.b32.xlu0 %v908, 32
    %v1141 = vpop.permute.xlu0 %1140
    %1146 = vxpose.xlu0.c.b16.start [1/8] %v1135, 128
    %1147 = vxpose.xlu0.c.b16.cont [2/8] %v1137, 128
    %1148 = vxpose.xlu0.c.b16.cont [3/8] %v1139, 128
    %1149 = vxpose.xlu0.c.b16.cont [4/8] %v1141, 128
    %1150 = vxpose.xlu0.c.b16.cont [5/8] 0, 128
    %1151 = vxpose.xlu0.c.b16.cont [6/8] 0, 128
    %1152 = vxpose.xlu0.c.b16.cont [7/8] 0, 128
    %1153 = vxpose.xlu0.c.b16.end [8/8] 0, 128
    %v1154 = vpop.trf.xlu0
    %v1155 = vpop.trf.xlu0
    %v1156 = vpop.trf.xlu0
    %v1157 = vpop.trf.xlu0
    %v1158 = vpop.trf.xlu0
    %v1159 = vpop.trf.xlu0
    %v1160 = vpop.trf.xlu0
    %v1161 = vpop.trf.xlu0
    %1162 = vrot.lane.b32.xlu0 %v945, 32
    %v1163 = vpop.permute.xlu0 %1162
    %1164 = vrot.lane.b32.xlu0 %v946, 32
    %v1165 = vpop.permute.xlu0 %1164
    %1166 = vrot.lane.b32.xlu0 %v947, 32
    %v1167 = vpop.permute.xlu0 %1166
    %1168 = vrot.lane.b32.xlu0 %v948, 32
    %v1169 = vpop.permute.xlu0 %1168
    %v1175 = vsel %vm953, %v1154, 0
    %v1178 = vsel %vm953, %v1155, 0
    %1180 = vmatpush.bf16.msra.mxu0 0
    %1181 = vmatpush.bf16.msra.mxu0 0
    %1182 = vmatpush.bf16.msra.mxu0 0
    %1183 = vmatpush.bf16.msra.mxu0 0
    %1184 = vmatpush.bf16.msra.mxu0 %v1169
    %1185 = vmatpush.bf16.msra.mxu0 %v1167
    %1186 = vmatpush.bf16.msra.mxu0 %v1165
    %1187 = vmatpush.bf16.msra.mxu0 %v1163
    %1188 = vmatmul.bf16.gmra.mxu0 %v1175
    %v1189 = vpop.f32.mrf.mxu0
    %v1190 = vadd.f32 0.0, %v1189
    %v1191 = vpop.f32.mrf.mxu0
    %v1192 = vadd.f32 0.0, %v1191
    %1193 = vmatmul.bf16.gmra.mxu0 %v1178
    %v1194 = vpop.f32.mrf.mxu0
    %v1195 = vadd.f32 0.0, %v1194
    %v1196 = vpop.f32.mrf.mxu0
    %v1197 = vadd.f32 0.0, %v1196
    %1198 = vdwg.mxu0
    %v1199 = vpack.c.bf16 %v1190, %v1190
    %v1200 = vpack.c.bf16 %v1192, %v1192
    %v1201 = vpack.c.bf16 %v1195, %v1195
    %v1202 = vpack.c.bf16 %v1197, %v1197
    %1203 = vst.msk [vmem:[%s13 + $0x30] sm:$0xf] %vm983, %v1199
    %1204 = vst.msk [vmem:[%s13 + $0x34] sm:$0xf] %vm983, %v1200
    %1205 = vst.msk [vmem:[%s13 + $0x38] sm:$0xf] %vm983, %v1201
    %1206 = vst.msk [vmem:[%s13 + $0x3c] sm:$0xf] %vm983, %v1202
    // Predicated region
    $region66: #{tpu_custom_call.1} parent=1 // pred_check
      _
    $region67: #{tpu_custom_call.1} parent=1 // pred_check_branch
      %1208 = sbr.rel (0) target = $region69
    $region68: #{tpu_custom_call.1} parent=1 // pred_region
      %1210 = vsyncadd [#allocation4], 0
      %s1211 = sshll.u32 [#allocation13], 4
      %s1212 = int_to_ptr.vmem [resolvable:$true] %s1211
      %s1213 = sshll.u32 %s10, 4
      %s1214 = int_to_ptr.hbm [resolvable:$true] %s1213
      %1219 = dma.vmem_to_hbm [thread:$0]  %s1212, 1024, %s1214, [#allocation4], 64, 64, 4
    $region69: #{tpu_custom_call.1} parent=1 // pred_fallthru
      _
    // Predicated region
    $region70: #{tpu_custom_call.1} parent=1 // pred_check
      _
    $region71: #{tpu_custom_call.1} parent=1 // pred_check_branch
      %1221 = sbr.rel (0) target = $region73
    $region72: #{tpu_custom_call.1} parent=1 // pred_region
      %1223 = vsyncadd [#allocation15], 0
      %s1225 = sshll.u32 [#allocation14], 4
      %s1226 = int_to_ptr.vmem [resolvable:$true] %s1225
      %s1227 = sshll.u32 %s11, 4
      %s1228 = int_to_ptr.hbm [resolvable:$true] %s1227
      %1230 = dma.vmem_to_hbm [thread:$0]  %s1226, 16, %s1228, [#allocation15]
    $region73: #{tpu_custom_call.1} parent=1 // pred_fallthru
      _
    // Predicated region
    $region74: #{tpu_custom_call.1} parent=1 // pred_check
      _
    $region75: #{tpu_custom_call.1} parent=1 // pred_check_branch
      %1232 = sbr.rel (0) target = $region77
    $region76: #{tpu_custom_call.1} parent=1 // pred_region
      %1234 = vsyncadd [#allocation15], 0
      %s1236 = sshll.u32 [#allocation16], 4
      %s1237 = int_to_ptr.vmem [resolvable:$true] %s1236
      %s1238 = sshll.u32 %s12, 4
      %s1239 = int_to_ptr.hbm [resolvable:$true] %s1238
      %1241 = dma.vmem_to_hbm [thread:$0]  %s1237, 16, %s1239, [#allocation15]
    $region77: #{tpu_custom_call.1} parent=1 // pred_fallthru
      _
    // Predicated region
    $region78: #{tpu_custom_call.1} parent=1 // pred_check
      _
    $region79: #{tpu_custom_call.1} parent=1 // pred_check_branch
      %1243 = sbr.rel (0) target = $region81
    $region80: #{tpu_custom_call.1} parent=1 // pred_region
      _
    $region81: #{tpu_custom_call.1} parent=1 // pred_fallthru
      _
    // Predicated region
    $region82: #{tpu_custom_call.1} parent=1 // pred_check
      _
    $region83: #{tpu_custom_call.1} parent=1 // pred_check_branch
      %1245 = sbr.rel (0) target = $region85
    $region84: #{tpu_custom_call.1} parent=1 // pred_region
      %1247 = dma.done [#allocation4], 1024
    $region85: #{tpu_custom_call.1} parent=1 // pred_fallthru
      _
    // Predicated region
    $region86: #{tpu_custom_call.1} parent=1 // pred_check
      _
    $region87: #{tpu_custom_call.1} parent=1 // pred_check_branch
      %1249 = sbr.rel (0) target = $region89
    $region88: #{tpu_custom_call.1} parent=1 // pred_region
      %1251 = dma.done [#allocation15], 16
    $region89: #{tpu_custom_call.1} parent=1 // pred_fallthru
      _
    // Predicated region
    $region90: #{tpu_custom_call.1} parent=1 // pred_check
      _
    $region91: #{tpu_custom_call.1} parent=1 // pred_check_branch
      %1253 = sbr.rel (0) target = $region93
    $region92: #{tpu_custom_call.1} parent=1 // pred_region
      %1255 = dma.done [#allocation15], 16
    $region93: #{tpu_custom_call.1} parent=1 // pred_fallthru
      _
    // Predicated region
    $region94: #{tpu_custom_call.1} parent=1 // pred_check
      _
    $region95: #{tpu_custom_call.1} parent=1 // pred_check_branch
      %1257 = sbr.rel (0) target = $region97
    $region96: #{tpu_custom_call.1} parent=1 // pred_region
      _
    $region97: #{tpu_custom_call.1} parent=1 // pred_fallthru
      _
    %1258 = vsyncpa [#allocation3], 1
    %1259 = vsyncpa [#allocation6], 1
    %1260 = vsyncpa [#allocation9], 1
    %1261 = vsyncpa [#allocation12], 1
    %1262 = vsyncpa [#allocation4], 1
    %1263 = vsyncpa [#allocation15], 1

</llo_original>
